<compile_context>
chip_gen: v7x
topology: tpu7x:2x2x1
jax: 0.10.0
libtpu: 0.0.40
codegen_flags: <defaults>
</compile_context>

<pallas_src>
import functools
import math

import jax
import jax.numpy as jnp
from jax.experimental import pallas as pl
from jax.experimental.pallas import tpu as pltpu

LANE = 128


# ----------------------------------------------------------------------------
# Fused Pallas kernel: the whole UnifiedModel forward in one call.
# ----------------------------------------------------------------------------
def _fused_unified_kernel(
    # data
    src_ref, gmat_ref, adj_ref, tgt_ref,
    # weights (bf16) / biases (f32), all lane-padded to multiples of 128
    w_enc_ref, b_enc_ref, w_tr_ref, b_tr_ref, w_g_ref,
    w_cls_ref, b_cls_ref, w_dt_ref, b_dt_ref,
    w_q_ref, b_q_ref, w_dec_q_ref, w_dec_c_ref, b_dec_ref,
    w_gen_ref, b_gen_ref,
    # outputs
    scores_ref, attn_ref, dec_hidden_ref, pred_ref,
    *, B, S, N, T, scale):
  f32, bf16 = jnp.float32, jnp.bfloat16

  # ---- seq_encoder: one (B*S, Dp)x(Dp, Hp) matmul; per-batch mean -> hidden
  seq = jnp.tanh(
      jnp.dot(src_ref[...], w_enc_ref[...], preferred_element_type=f32)
      + b_enc_ref[...])                                    # [B*S, Hp] f32
  hidden = jnp.mean(seq.reshape(B, S, -1), axis=1)         # [B, Hp]

  # ---- encoder_transformer: one-hot gather on the MXU + relu projection
  gathered = jnp.dot(gmat_ref[...], seq.astype(bf16),
                     preferred_element_type=f32)           # [B*N, Hp]
  node_in = jnp.maximum(
      jnp.dot(gathered.astype(bf16), w_tr_ref[...], preferred_element_type=f32)
      + b_tr_ref[...], 0.0)

  # ---- graph_encoder: relu(A_blockdiag @ X @ W_g)
  ax = jnp.dot(adj_ref[...], node_in.astype(bf16), preferred_element_type=f32)
  node_out = jnp.maximum(
      jnp.dot(ax.astype(bf16), w_g_ref[...], preferred_element_type=f32), 0.0)

  # ---- classifier (lane-padded output slab, sliced in the wrapper)
  scores_ref[...] = (
      jnp.dot(node_out.astype(bf16), w_cls_ref[...], preferred_element_type=f32)
      + b_cls_ref[...]).astype(scores_ref.dtype)

  # ---- decoder_transformer
  enc_out = jnp.maximum(
      jnp.dot(node_out.astype(bf16), w_dt_ref[...], preferred_element_type=f32)
      + b_dt_ref[...], 0.0)                                # [B*N, Hp]

  # ---- decoder: q projection + fused hidden injection + attention
  q_pre = (jnp.dot(tgt_ref[...], w_q_ref[...], preferred_element_type=f32)
           + b_q_ref[...])                                 # [B*T, Hp]
  q3 = jnp.tanh(q_pre.reshape(B, T, -1) + hidden[:, None, :])   # [B, T, Hp]
  enc3 = enc_out.reshape(B, N, -1)                              # [B, N, Hp]

  s = jnp.einsum('bth,bnh->btn', q3.astype(bf16), enc3.astype(bf16),
                 preferred_element_type=f32) * scale            # [B, T, N]
  m = jnp.max(s, axis=-1, keepdims=True)
  p = jnp.exp(s - m)
  inv_l = pl.reciprocal(jnp.sum(p, axis=-1, keepdims=True), approx=True)
  ctx = jnp.einsum('btn,bnh->bth', p.astype(bf16), enc3.astype(bf16),
                   preferred_element_type=f32) * inv_l          # [B, T, Hp]
  attn_ref[...] = (p * inv_l).astype(attn_ref.dtype)

  # ---- decoder output projection: split W_dec, no concat
  q_flat = q3.reshape(B * T, -1)
  ctx_flat = ctx.reshape(B * T, -1)
  dec_h = jnp.tanh(
      jnp.dot(q_flat.astype(bf16), w_dec_q_ref[...], preferred_element_type=f32)
      + jnp.dot(ctx_flat.astype(bf16), w_dec_c_ref[...],
                preferred_element_type=f32)
      + b_dec_ref[...])                                    # [B*T, Hp]
  dec_hidden_ref[...] = dec_h.astype(dec_hidden_ref.dtype)

  # ---- generator: log-softmax over the padded vocab (pad bias = -1e30)
  logits = (jnp.dot(dec_h.astype(bf16), w_gen_ref[...],
                    preferred_element_type=f32) + b_gen_ref[...])
  lm = jnp.max(logits, axis=-1, keepdims=True)
  z = logits - lm
  lse = jnp.log(jnp.sum(jnp.exp(z), axis=-1, keepdims=True))
  pred_ref[...] = (z - lse).astype(pred_ref.dtype)


def _full_spec(shape):
  zeros = (0,) * len(shape)
  return pl.BlockSpec(shape, lambda i, _z=zeros: _z)


# ----------------------------------------------------------------------------
# Parameter construction + lane padding (weight-build-time layout plumbing)
# ----------------------------------------------------------------------------
def make_params(key, *, src_vocab, tgt_vocab, D, H, C, V):
  ks = jax.random.split(key, 16)
  s = 0.1
  return {
      "embed_src": s * jax.random.normal(ks[0], (src_vocab, D), jnp.float32),
      "embed_tgt": s * jax.random.normal(ks[1], (tgt_vocab, D), jnp.float32),
      "W_enc": s * jax.random.normal(ks[2], (D, H), jnp.float32),
      "b_enc": jnp.zeros((H,), jnp.float32),
      "W_tr": s * jax.random.normal(ks[3], (H, H), jnp.float32),
      "b_tr": jnp.zeros((H,), jnp.float32),
      "W_g": s * jax.random.normal(ks[4], (H, H), jnp.float32),
      "W_cls": s * jax.random.normal(ks[5], (H, C), jnp.float32),
      "b_cls": jnp.zeros((C,), jnp.float32),
      "W_dt": s * jax.random.normal(ks[6], (H, H), jnp.float32),
      "b_dt": jnp.zeros((H,), jnp.float32),
      "W_q": s * jax.random.normal(ks[7], (D, H), jnp.float32),
      "b_q": jnp.zeros((H,), jnp.float32),
      "W_dec": s * jax.random.normal(ks[8], (2 * H, H), jnp.float32),
      "b_dec": jnp.zeros((H,), jnp.float32),
      "W_gen": s * jax.random.normal(ks[9], (H, V), jnp.float32),
      "b_gen": jnp.zeros((V,), jnp.float32),
  }


def _pad2d(w, rows, cols, dtype=jnp.bfloat16):
  out = jnp.zeros((rows, cols), jnp.float32)
  out = out.at[: w.shape[0], : w.shape[1]].set(w)
  return out.astype(dtype)


def _pad_bias(b, cols, fill=0.0):
  out = jnp.full((1, cols), fill, jnp.float32)
  return out.at[0, : b.shape[0]].set(b)


def pad_params(params):
  """Pad feature dims to multiples of 128 (zero / -inf-like padding) and cast
  MXU weights to bf16; zero-padded lanes propagate zeros through tanh/relu so
  logical results are unchanged."""
  rup = lambda x: ((x + LANE - 1) // LANE) * LANE
  D, H = params["W_enc"].shape
  C = params["W_cls"].shape[1]
  V = params["W_gen"].shape[1]
  Dp, Hp, Cp, Vp = rup(D), rup(H), rup(C), rup(V)
  W_dec = params["W_dec"]
  pp = {
      "embed_src": _pad2d(params["embed_src"], params["embed_src"].shape[0], Dp),
      "embed_tgt": _pad2d(params["embed_tgt"], params["embed_tgt"].shape[0], Dp),
      "W_enc": _pad2d(params["W_enc"], Dp, Hp),
      "b_enc": _pad_bias(params["b_enc"], Hp),
      "W_tr": _pad2d(params["W_tr"], Hp, Hp),
      "b_tr": _pad_bias(params["b_tr"], Hp),
      "W_g": _pad2d(params["W_g"], Hp, Hp),
      "W_cls": _pad2d(params["W_cls"], Hp, Cp),
      "b_cls": _pad_bias(params["b_cls"], Cp),
      "W_dt": _pad2d(params["W_dt"], Hp, Hp),
      "b_dt": _pad_bias(params["b_dt"], Hp),
      "W_q": _pad2d(params["W_q"], Dp, Hp),
      "b_q": _pad_bias(params["b_q"], Hp),
      "W_dec_q": _pad2d(W_dec[:H], Hp, Hp),     # split halves: no concat needed
      "W_dec_c": _pad2d(W_dec[H:], Hp, Hp),
      "b_dec": _pad_bias(params["b_dec"], Hp),
      "W_gen": _pad2d(params["W_gen"], Hp, Vp),
      # pad vocab lanes get -1e30 so they vanish from the log-softmax
      "b_gen": _pad_bias(params["b_gen"], Vp, fill=-1e30),
  }
  dims = dict(D=D, H=H, C=C, V=V, Dp=Dp, Hp=Hp, Cp=Cp, Vp=Vp)
  return pp, dims


# ----------------------------------------------------------------------------
# UnifiedModel forward: wrapper glue (embeddings / gather-matrix / block-diag
# adjacency) + one fused pallas_call.
# ----------------------------------------------------------------------------
def unified_model_forward(pparams, dims, inputs, model_type="unified"):
  src_seq = inputs["seq-encoder"]["src_seq"]
  tgt_seq = inputs["decoder"]["tgt_seq"]
  index = inputs["encoder-transform"]["index"]
  edges = inputs["graph-encoder"]["edges"]

  B, S = src_seq.shape
  _, T = tgt_seq.shape
  _, N = index.shape
  H, C, V = dims["H"], dims["C"], dims["V"]
  Dp, Hp, Cp, Vp = dims["Dp"], dims["Hp"], dims["Cp"], dims["Vp"]

  # --- wrapper-side layout plumbing (all tiny) -------------------------------
  src_emb = jnp.take(pparams["embed_src"], src_seq, axis=0).reshape(B * S, Dp)
  tgt_emb = jnp.take(pparams["embed_tgt"], tgt_seq, axis=0).reshape(B * T, Dp)

  # one-hot gather matrix: gathered = G @ seq_output  (MXU work in-kernel)
  idx_global = (index + jnp.arange(B, dtype=jnp.int32)[:, None] * S
                ).reshape(B * N, 1)
  gmat = (idx_global == jnp.arange(B * S, dtype=jnp.int32)[None, :]
          ).astype(jnp.bfloat16)                              # [B*N, B*S]

  # block-diagonal adjacency so the graph conv is a single 2-D matmul
  a_bd = jnp.zeros((B * N, B * N), jnp.float32)
  for b in range(B):  # B is a static python int
    a_bd = a_bd.at[b * N:(b + 1) * N, b * N:(b + 1) * N].set(edges[b])
  a_bd = a_bd.astype(jnp.bfloat16)

  operands = [
      src_emb, gmat, a_bd, tgt_emb,
      pparams["W_enc"], pparams["b_enc"], pparams["W_tr"], pparams["b_tr"],
      pparams["W_g"], pparams["W_cls"], pparams["b_cls"],
      pparams["W_dt"], pparams["b_dt"],
      pparams["W_q"], pparams["b_q"],
      pparams["W_dec_q"], pparams["W_dec_c"], pparams["b_dec"],
      pparams["W_gen"], pparams["b_gen"],
  ]

  out_shapes = (
      jax.ShapeDtypeStruct((B * N, Cp), jnp.float32),   # classification (padded)
      jax.ShapeDtypeStruct((B, T, N), jnp.float32),     # attention weights
      jax.ShapeDtypeStruct((B * T, Hp), jnp.float32),   # decoder hidden (padded)
      jax.ShapeDtypeStruct((B * T, Vp), jnp.float32),   # generator log-probs
  )

  # rough cost hint for the XLA scheduler
  mm = lambda m, k, n: 2 * m * k * n
  flops = (mm(B * S, Dp, Hp) + mm(B * N, B * S, Hp) + 3 * mm(B * N, Hp, Hp)
           + mm(B * N, B * N, Hp) + mm(B * N, Hp, Cp) + mm(B * T, Dp, Hp)
           + 2 * mm(B * T, N, Hp) + 2 * mm(B * T, Hp, Hp) + mm(B * T, Hp, Vp))
  transcendentals = B * S * Hp + 2 * B * T * Hp + B * T * N + B * T * Vp
  bytes_accessed = int(sum(x.size * x.dtype.itemsize for x in operands)
                       + 4 * (B * N * Cp + B * T * N + B * T * Hp + B * T * Vp))

  kernel = functools.partial(_fused_unified_kernel, B=B, S=S, N=N, T=T,
                             scale=1.0 / math.sqrt(H))

  scores_pad, attn, dec_hidden_pad, pred_pad = pl.pallas_call(
      kernel,
      out_shape=out_shapes,
      grid=(1,),
      in_specs=[_full_spec(x.shape) for x in operands],
      out_specs=tuple(_full_spec(o.shape) for o in out_shapes),
      compiler_params=pltpu.CompilerParams(
          dimension_semantics=("arbitrary",),
          vmem_limit_bytes=32 * 1024 * 1024),
      cost_estimate=pl.CostEstimate(flops=flops,
                                    transcendentals=transcendentals,
                                    bytes_accessed=bytes_accessed),
  )(*operands)

  # --- slice padded slabs back to logical shapes ------------------------------
  scores = scores_pad[:, :C].reshape(B, N, C)
  dec_hidden = dec_hidden_pad[:, :H].reshape(B, T, H)
  pred = pred_pad[:, :V].reshape(B, T, V)

  outputs = {}
  if model_type != "generate":
    outputs["classification"] = scores
  gen = {"attn": attn}
  # (generator is always computed in-kernel; for 'classify' we just return the
  #  pre-generator decoder hidden state, mirroring the reference wiring)
  gen["pred"] = pred if model_type != "classify" else dec_hidden
  outputs["generation"] = gen
  return outputs


# ----------------------------------------------------------------------------
# Smoke test
# ----------------------------------------------------------------------------
if __name__ == "__main__":
  B, S, N, T = 2, 16, 8, 8
  D, H, C, V = 32, 32, 2, 64
  SRC_VOCAB, TGT_VOCAB = 50, V

  key = jax.random.PRNGKey(0)
  kp, k1, k2, k3, k4 = jax.random.split(key, 5)

  params = make_params(kp, src_vocab=SRC_VOCAB, tgt_vocab=TGT_VOCAB,
                       D=D, H=H, C=C, V=V)
  pparams, dims = pad_params(params)

  src_seq = jax.random.randint(k1, (B, S), 0, SRC_VOCAB, dtype=jnp.int32)
  tgt_seq = jax.random.randint(k2, (B, T), 0, TGT_VOCAB, dtype=jnp.int32)
  index = jax.random.randint(k3, (B, N), 0, S, dtype=jnp.int32)
  adj_raw = jnp.abs(jax.random.normal(k4, (B, N, N), jnp.float32)) + 0.1
  edges = adj_raw / jnp.sum(adj_raw, axis=-1, keepdims=True)
  lengths = jnp.full((B,), S, jnp.int32)

  inputs = {
      "seq-encoder": {"src_seq": src_seq, "lengths": lengths, "feat_seqs": None},
      "graph-encoder": {"edges": edges},
      "encoder-transform": {"index": index, "lengths": lengths, "root": None},
      "decoder": {"tgt_seq": tgt_seq, "src_seq": src_seq, "feat_seqs": None},
      "decoder-transform": {},
  }

  outputs = unified_model_forward(pparams, dims, inputs, model_type="unified")
  jax.block_until_ready(outputs)

  assert outputs["classification"].shape == (B, N, C)
  assert outputs["generation"]["pred"].shape == (B, T, V)
  assert outputs["generation"]["attn"].shape == (B, T, N)
  assert bool(jnp.all(jnp.isfinite(outputs["generation"]["pred"])))
  assert bool(jnp.all(jnp.isfinite(outputs["classification"])))
  print("KERNEL_OK")
</pallas_src>

<mosaic_0001>
module attributes {stable_mosaic.version = 11 : i64} {
  func.func @_fused_unified_kernel(%arg0: i32, %arg1: memref<32x128xbf16, #tpu.memory_space<vmem>>, %arg2: memref<16x32xbf16, #tpu.memory_space<vmem>>, %arg3: memref<16x16xbf16, #tpu.memory_space<vmem>>, %arg4: memref<16x128xbf16, #tpu.memory_space<vmem>>, %arg5: memref<128x128xbf16, #tpu.memory_space<vmem>>, %arg6: memref<1x128xf32, #tpu.memory_space<vmem>>, %arg7: memref<128x128xbf16, #tpu.memory_space<vmem>>, %arg8: memref<1x128xf32, #tpu.memory_space<vmem>>, %arg9: memref<128x128xbf16, #tpu.memory_space<vmem>>, %arg10: memref<128x128xbf16, #tpu.memory_space<vmem>>, %arg11: memref<1x128xf32, #tpu.memory_space<vmem>>, %arg12: memref<128x128xbf16, #tpu.memory_space<vmem>>, %arg13: memref<1x128xf32, #tpu.memory_space<vmem>>, %arg14: memref<128x128xbf16, #tpu.memory_space<vmem>>, %arg15: memref<1x128xf32, #tpu.memory_space<vmem>>, %arg16: memref<128x128xbf16, #tpu.memory_space<vmem>>, %arg17: memref<128x128xbf16, #tpu.memory_space<vmem>>, %arg18: memref<1x128xf32, #tpu.memory_space<vmem>>, %arg19: memref<128x128xbf16, #tpu.memory_space<vmem>>, %arg20: memref<1x128xf32, #tpu.memory_space<vmem>>, %arg21: memref<16x128xf32, #tpu.memory_space<vmem>>, %arg22: memref<2x8x8xf32, #tpu.memory_space<vmem>>, %arg23: memref<16x128xf32, #tpu.memory_space<vmem>>, %arg24: memref<16x128xf32, #tpu.memory_space<vmem>>) attributes {dimension_semantics = [#tpu.dimension_semantics<arbitrary>], iteration_bounds = array<i64: 1>, scalar_prefetch = 0 : i64, scratch_operands = 0 : i64, tpu.core_type = #tpu.core_type<tc>, window_params = [{pipeline_mode = #tpu.pipeline_mode<synchronous>, transform_indices = @transform_0, window_bounds = array<i64: 32, 128>}, {pipeline_mode = #tpu.pipeline_mode<synchronous>, transform_indices = @transform_1, window_bounds = array<i64: 16, 32>}, {pipeline_mode = #tpu.pipeline_mode<synchronous>, transform_indices = @transform_2, window_bounds = array<i64: 16, 16>}, {pipeline_mode = #tpu.pipeline_mode<synchronous>, transform_indices = @transform_3, window_bounds = array<i64: 16, 128>}, {pipeline_mode = #tpu.pipeline_mode<synchronous>, transform_indices = @transform_4, window_bounds = array<i64: 128, 128>}, {pipeline_mode = #tpu.pipeline_mode<synchronous>, transform_indices = @transform_5, window_bounds = array<i64: 1, 128>}, {pipeline_mode = #tpu.pipeline_mode<synchronous>, transform_indices = @transform_6, window_bounds = array<i64: 128, 128>}, {pipeline_mode = #tpu.pipeline_mode<synchronous>, transform_indices = @transform_7, window_bounds = array<i64: 1, 128>}, {pipeline_mode = #tpu.pipeline_mode<synchronous>, transform_indices = @transform_8, window_bounds = array<i64: 128, 128>}, {pipeline_mode = #tpu.pipeline_mode<synchronous>, transform_indices = @transform_9, window_bounds = array<i64: 128, 128>}, {pipeline_mode = #tpu.pipeline_mode<synchronous>, transform_indices = @transform_10, window_bounds = array<i64: 1, 128>}, {pipeline_mode = #tpu.pipeline_mode<synchronous>, transform_indices = @transform_11, window_bounds = array<i64: 128, 128>}, {pipeline_mode = #tpu.pipeline_mode<synchronous>, transform_indices = @transform_12, window_bounds = array<i64: 1, 128>}, {pipeline_mode = #tpu.pipeline_mode<synchronous>, transform_indices = @transform_13, window_bounds = array<i64: 128, 128>}, {pipeline_mode = #tpu.pipeline_mode<synchronous>, transform_indices = @transform_14, window_bounds = array<i64: 1, 128>}, {pipeline_mode = #tpu.pipeline_mode<synchronous>, transform_indices = @transform_15, window_bounds = array<i64: 128, 128>}, {pipeline_mode = #tpu.pipeline_mode<synchronous>, transform_indices = @transform_16, window_bounds = array<i64: 128, 128>}, {pipeline_mode = #tpu.pipeline_mode<synchronous>, transform_indices = @transform_17, window_bounds = array<i64: 1, 128>}, {pipeline_mode = #tpu.pipeline_mode<synchronous>, transform_indices = @transform_18, window_bounds = array<i64: 128, 128>}, {pipeline_mode = #tpu.pipeline_mode<synchronous>, transform_indices = @transform_19, window_bounds = array<i64: 1, 128>}, {pipeline_mode = #tpu.pipeline_mode<synchronous>, transform_indices = @transform_20, window_bounds = array<i64: 16, 128>}, {pipeline_mode = #tpu.pipeline_mode<synchronous>, transform_indices = @transform_21, window_bounds = array<i64: 2, 8, 8>}, {pipeline_mode = #tpu.pipeline_mode<synchronous>, transform_indices = @transform_22, window_bounds = array<i64: 16, 128>}, {pipeline_mode = #tpu.pipeline_mode<synchronous>, transform_indices = @transform_23, window_bounds = array<i64: 16, 128>}]} {
    %c0 = arith.constant 0 : index
    %c0_0 = arith.constant 0 : index
    %0 = vector.load %arg1[%c0, %c0_0] : memref<32x128xbf16, #tpu.memory_space<vmem>>, vector<32x128xbf16>
    %c0_1 = arith.constant 0 : index
    %c0_2 = arith.constant 0 : index
    %1 = vector.load %arg5[%c0_1, %c0_2] : memref<128x128xbf16, #tpu.memory_space<vmem>>, vector<128x128xbf16>
    %cst = arith.constant dense<0.000000e+00> : vector<32x128xf32>
    %2 = tpu.matmul %0, %1, %cst {dimension_numbers = #tpu.dot_dimension_numbers<[1], [0], [0], [1], [0, 0, 1, 1], [], []>} : vector<32x128xbf16>, vector<128x128xbf16>, vector<32x128xf32> -> vector<32x128xf32>
    %c0_3 = arith.constant 0 : index
    %c0_4 = arith.constant 0 : index
    %3 = vector.load %arg6[%c0_3, %c0_4] : memref<1x128xf32, #tpu.memory_space<vmem>>, vector<1x128xf32>
    %4 = vector.broadcast %3 : vector<1x128xf32> to vector<32x128xf32>
    %5 = arith.addf %2, %4 : vector<32x128xf32>
    %6 = math.tanh %5 : vector<32x128xf32>
    %7 = vector.shape_cast %6 : vector<32x128xf32> to vector<2x16x128xf32>
    %cst_5 = arith.constant dense<0.000000e+00> : vector<2x128xf32>
    %8 = vector.multi_reduction <add>, %7, %cst_5 [1] : vector<2x16x128xf32> to vector<2x128xf32>
    %cst_6 = arith.constant 1.600000e+01 : f32
    %9 = vector.broadcast %cst_6 : f32 to vector<2x128xf32>
    %10 = arith.divf %8, %9 : vector<2x128xf32>
    %c0_7 = arith.constant 0 : index
    %c0_8 = arith.constant 0 : index
    %11 = vector.load %arg2[%c0_7, %c0_8] : memref<16x32xbf16, #tpu.memory_space<vmem>>, vector<16x32xbf16>
    %12 = arith.truncf %6 : vector<32x128xf32> to vector<32x128xbf16>
    %cst_9 = arith.constant dense<0.000000e+00> : vector<16x128xf32>
    %13 = tpu.matmul %11, %12, %cst_9 {dimension_numbers = #tpu.dot_dimension_numbers<[1], [0], [0], [1], [0, 0, 1, 1], [], []>} : vector<16x32xbf16>, vector<32x128xbf16>, vector<16x128xf32> -> vector<16x128xf32>
    %14 = arith.truncf %13 : vector<16x128xf32> to vector<16x128xbf16>
    %c0_10 = arith.constant 0 : index
    %c0_11 = arith.constant 0 : index
    %15 = vector.load %arg7[%c0_10, %c0_11] : memref<128x128xbf16, #tpu.memory_space<vmem>>, vector<128x128xbf16>
    %cst_12 = arith.constant dense<0.000000e+00> : vector<16x128xf32>
    %16 = tpu.matmul %14, %15, %cst_12 {dimension_numbers = #tpu.dot_dimension_numbers<[1], [0], [0], [1], [0, 0, 1, 1], [], []>} : vector<16x128xbf16>, vector<128x128xbf16>, vector<16x128xf32> -> vector<16x128xf32>
    %c0_13 = arith.constant 0 : index
    %c0_14 = arith.constant 0 : index
    %17 = vector.load %arg8[%c0_13, %c0_14] : memref<1x128xf32, #tpu.memory_space<vmem>>, vector<1x128xf32>
    %18 = vector.broadcast %17 : vector<1x128xf32> to vector<16x128xf32>
    %19 = arith.addf %16, %18 : vector<16x128xf32>
    %cst_15 = arith.constant 0.000000e+00 : f32
    %20 = vector.broadcast %cst_15 : f32 to vector<16x128xf32>
    %21 = arith.maximumf %19, %20 : vector<16x128xf32>
    %c0_16 = arith.constant 0 : index
    %c0_17 = arith.constant 0 : index
    %22 = vector.load %arg3[%c0_16, %c0_17] : memref<16x16xbf16, #tpu.memory_space<vmem>>, vector<16x16xbf16>
    %23 = arith.truncf %21 : vector<16x128xf32> to vector<16x128xbf16>
    %cst_18 = arith.constant dense<0.000000e+00> : vector<16x128xf32>
    %24 = tpu.matmul %22, %23, %cst_18 {dimension_numbers = #tpu.dot_dimension_numbers<[1], [0], [0], [1], [0, 0, 1, 1], [], []>} : vector<16x16xbf16>, vector<16x128xbf16>, vector<16x128xf32> -> vector<16x128xf32>
    %25 = arith.truncf %24 : vector<16x128xf32> to vector<16x128xbf16>
    %c0_19 = arith.constant 0 : index
    %c0_20 = arith.constant 0 : index
    %26 = vector.load %arg9[%c0_19, %c0_20] : memref<128x128xbf16, #tpu.memory_space<vmem>>, vector<128x128xbf16>
    %cst_21 = arith.constant dense<0.000000e+00> : vector<16x128xf32>
    %27 = tpu.matmul %25, %26, %cst_21 {dimension_numbers = #tpu.dot_dimension_numbers<[1], [0], [0], [1], [0, 0, 1, 1], [], []>} : vector<16x128xbf16>, vector<128x128xbf16>, vector<16x128xf32> -> vector<16x128xf32>
    %cst_22 = arith.constant 0.000000e+00 : f32
    %28 = vector.broadcast %cst_22 : f32 to vector<16x128xf32>
    %29 = arith.maximumf %27, %28 : vector<16x128xf32>
    %30 = arith.truncf %29 : vector<16x128xf32> to vector<16x128xbf16>
    %c0_23 = arith.constant 0 : index
    %c0_24 = arith.constant 0 : index
    %31 = vector.load %arg10[%c0_23, %c0_24] : memref<128x128xbf16, #tpu.memory_space<vmem>>, vector<128x128xbf16>
    %cst_25 = arith.constant dense<0.000000e+00> : vector<16x128xf32>
    %32 = tpu.matmul %30, %31, %cst_25 {dimension_numbers = #tpu.dot_dimension_numbers<[1], [0], [0], [1], [0, 0, 1, 1], [], []>} : vector<16x128xbf16>, vector<128x128xbf16>, vector<16x128xf32> -> vector<16x128xf32>
    %c0_26 = arith.constant 0 : index
    %c0_27 = arith.constant 0 : index
    %33 = vector.load %arg11[%c0_26, %c0_27] : memref<1x128xf32, #tpu.memory_space<vmem>>, vector<1x128xf32>
    %34 = vector.broadcast %33 : vector<1x128xf32> to vector<16x128xf32>
    %35 = arith.addf %32, %34 : vector<16x128xf32>
    %c0_28 = arith.constant 0 : index
    %c0_29 = arith.constant 0 : index
    %36 = vector.load %arg21[%c0_28, %c0_29] : memref<16x128xf32, #tpu.memory_space<vmem>>, vector<16x128xf32>
    tpu.vector_store %arg21[%c0_28, %c0_29], %35 {strides = array<i32>} : memref<16x128xf32, #tpu.memory_space<vmem>>, vector<16x128xf32>,
    %37 = arith.truncf %29 : vector<16x128xf32> to vector<16x128xbf16>
    %c0_30 = arith.constant 0 : index
    %c0_31 = arith.constant 0 : index
    %38 = vector.load %arg12[%c0_30, %c0_31] : memref<128x128xbf16, #tpu.memory_space<vmem>>, vector<128x128xbf16>
    %cst_32 = arith.constant dense<0.000000e+00> : vector<16x128xf32>
    %39 = tpu.matmul %37, %38, %cst_32 {dimension_numbers = #tpu.dot_dimension_numbers<[1], [0], [0], [1], [0, 0, 1, 1], [], []>} : vector<16x128xbf16>, vector<128x128xbf16>, vector<16x128xf32> -> vector<16x128xf32>
    %c0_33 = arith.constant 0 : index
    %c0_34 = arith.constant 0 : index
    %40 = vector.load %arg13[%c0_33, %c0_34] : memref<1x128xf32, #tpu.memory_space<vmem>>, vector<1x128xf32>
    %41 = vector.broadcast %40 : vector<1x128xf32> to vector<16x128xf32>
    %42 = arith.addf %39, %41 : vector<16x128xf32>
    %cst_35 = arith.constant 0.000000e+00 : f32
    %43 = vector.broadcast %cst_35 : f32 to vector<16x128xf32>
    %44 = arith.maximumf %42, %43 : vector<16x128xf32>
    %c0_36 = arith.constant 0 : index
    %c0_37 = arith.constant 0 : index
    %45 = vector.load %arg4[%c0_36, %c0_37] : memref<16x128xbf16, #tpu.memory_space<vmem>>, vector<16x128xbf16>
    %c0_38 = arith.constant 0 : index
    %c0_39 = arith.constant 0 : index
    %46 = vector.load %arg14[%c0_38, %c0_39] : memref<128x128xbf16, #tpu.memory_space<vmem>>, vector<128x128xbf16>
    %cst_40 = arith.constant dense<0.000000e+00> : vector<16x128xf32>
    %47 = tpu.matmul %45, %46, %cst_40 {dimension_numbers = #tpu.dot_dimension_numbers<[1], [0], [0], [1], [0, 0, 1, 1], [], []>} : vector<16x128xbf16>, vector<128x128xbf16>, vector<16x128xf32> -> vector<16x128xf32>
    %c0_41 = arith.constant 0 : index
    %c0_42 = arith.constant 0 : index
    %48 = vector.load %arg15[%c0_41, %c0_42] : memref<1x128xf32, #tpu.memory_space<vmem>>, vector<1x128xf32>
    %49 = vector.broadcast %48 : vector<1x128xf32> to vector<16x128xf32>
    %50 = arith.addf %47, %49 : vector<16x128xf32>
    %51 = vector.shape_cast %50 : vector<16x128xf32> to vector<2x8x128xf32>
    %52 = vector.shape_cast %10 : vector<2x128xf32> to vector<2x1x128xf32>
    %53 = vector.broadcast %52 : vector<2x1x128xf32> to vector<2x8x128xf32>
    %54 = arith.addf %51, %53 : vector<2x8x128xf32>
    %55 = math.tanh %54 : vector<2x8x128xf32>
    %56 = vector.shape_cast %44 : vector<16x128xf32> to vector<2x8x128xf32>
    %57 = arith.truncf %55 : vector<2x8x128xf32> to vector<2x8x128xbf16>
    %58 = arith.truncf %56 : vector<2x8x128xf32> to vector<2x8x128xbf16>
    "tpu.trace_start"() <{level = 10 : i32, message = "bth,bnh->btn"}> : () -> ()
    %cst_43 = arith.constant dense<0.000000e+00> : vector<2x8x8xf32>
    %59 = tpu.matmul %57, %58, %cst_43 {dimension_numbers = #tpu.dot_dimension_numbers<[2], [2], [1], [1], [0, 0, 0, 1, 1, 1], [0], [0]>} : vector<2x8x128xbf16>, vector<2x8x128xbf16>, vector<2x8x8xf32> -> vector<2x8x8xf32>
    "tpu.trace_stop"() : () -> ()
    %cst_44 = arith.constant 0.176776692 : f32
    %60 = vector.broadcast %cst_44 : f32 to vector<2x8x8xf32>
    %61 = arith.mulf %59, %60 : vector<2x8x8xf32>
    %cst_45 = arith.constant dense<0xFF800000> : vector<2x8xf32>
    %62 = vector.multi_reduction <maximumf>, %61, %cst_45 [2] : vector<2x8x8xf32> to vector<2x8xf32>
    %63 = vector.shape_cast %62 : vector<2x8xf32> to vector<2x8x1xf32>
    %64 = vector.broadcast %63 : vector<2x8x1xf32> to vector<2x8x8xf32>
    %65 = arith.subf %61, %64 : vector<2x8x8xf32>
    %66 = math.exp %65 : vector<2x8x8xf32>
    %cst_46 = arith.constant dense<0.000000e+00> : vector<2x8xf32>
    %67 = vector.multi_reduction <add>, %66, %cst_46 [2] : vector<2x8x8xf32> to vector<2x8xf32>
    %68 = vector.shape_cast %67 : vector<2x8xf32> to vector<2x8x1xf32>
    %69 = tpu.reciprocal %68 {approx = true} : vector<2x8x1xf32> -> vector<2x8x1xf32>
    %70 = arith.truncf %66 : vector<2x8x8xf32> to vector<2x8x8xbf16>
    %71 = arith.truncf %56 : vector<2x8x128xf32> to vector<2x8x128xbf16>
    "tpu.trace_start"() <{level = 10 : i32, message = "btn,bnh->bth"}> : () -> ()
    %cst_47 = arith.constant dense<0.000000e+00> : vector<2x8x128xf32>
    %72 = tpu.matmul %70, %71, %cst_47 {dimension_numbers = #tpu.dot_dimension_numbers<[2], [1], [1], [2], [0, 0, 0, 1, 1, 2], [0], [0]>} : vector<2x8x8xbf16>, vector<2x8x128xbf16>, vector<2x8x128xf32> -> vector<2x8x128xf32>
    "tpu.trace_stop"() : () -> ()
    %73 = vector.broadcast %69 : vector<2x8x1xf32> to vector<2x8x128xf32>
    %74 = arith.mulf %72, %73 : vector<2x8x128xf32>
    %75 = vector.broadcast %69 : vector<2x8x1xf32> to vector<2x8x8xf32>
    %76 = arith.mulf %66, %75 : vector<2x8x8xf32>
    %c0_48 = arith.constant 0 : index
    %c0_49 = arith.constant 0 : index
    %c0_50 = arith.constant 0 : index
    %77 = vector.load %arg22[%c0_48, %c0_49, %c0_50] : memref<2x8x8xf32, #tpu.memory_space<vmem>>, vector<2x8x8xf32>
    tpu.vector_store %arg22[%c0_48, %c0_49, %c0_50], %76 {strides = array<i32>} : memref<2x8x8xf32, #tpu.memory_space<vmem>>, vector<2x8x8xf32>,
    %78 = vector.shape_cast %55 : vector<2x8x128xf32> to vector<16x128xf32>
    %79 = vector.shape_cast %74 : vector<2x8x128xf32> to vector<16x128xf32>
    %80 = arith.truncf %78 : vector<16x128xf32> to vector<16x128xbf16>
    %c0_51 = arith.constant 0 : index
    %c0_52 = arith.constant 0 : index
    %81 = vector.load %arg16[%c0_51, %c0_52] : memref<128x128xbf16, #tpu.memory_space<vmem>>, vector<128x128xbf16>
    %cst_53 = arith.constant dense<0.000000e+00> : vector<16x128xf32>
    %82 = tpu.matmul %80, %81, %cst_53 {dimension_numbers = #tpu.dot_dimension_numbers<[1], [0], [0], [1], [0, 0, 1, 1], [], []>} : vector<16x128xbf16>, vector<128x128xbf16>, vector<16x128xf32> -> vector<16x128xf32>
    %83 = arith.truncf %79 : vector<16x128xf32> to vector<16x128xbf16>
    %c0_54 = arith.constant 0 : index
    %c0_55 = arith.constant 0 : index
    %84 = vector.load %arg17[%c0_54, %c0_55] : memref<128x128xbf16, #tpu.memory_space<vmem>>, vector<128x128xbf16>
    %cst_56 = arith.constant dense<0.000000e+00> : vector<16x128xf32>
    %85 = tpu.matmul %83, %84, %cst_56 {dimension_numbers = #tpu.dot_dimension_numbers<[1], [0], [0], [1], [0, 0, 1, 1], [], []>} : vector<16x128xbf16>, vector<128x128xbf16>, vector<16x128xf32> -> vector<16x128xf32>
    %86 = arith.addf %82, %85 : vector<16x128xf32>
    %c0_57 = arith.constant 0 : index
    %c0_58 = arith.constant 0 : index
    %87 = vector.load %arg18[%c0_57, %c0_58] : memref<1x128xf32, #tpu.memory_space<vmem>>, vector<1x128xf32>
    %88 = vector.broadcast %87 : vector<1x128xf32> to vector<16x128xf32>
    %89 = arith.addf %86, %88 : vector<16x128xf32>
    %90 = math.tanh %89 : vector<16x128xf32>
    %c0_59 = arith.constant 0 : index
    %c0_60 = arith.constant 0 : index
    %91 = vector.load %arg23[%c0_59, %c0_60] : memref<16x128xf32, #tpu.memory_space<vmem>>, vector<16x128xf32>
    tpu.vector_store %arg23[%c0_59, %c0_60], %90 {strides = array<i32>} : memref<16x128xf32, #tpu.memory_space<vmem>>, vector<16x128xf32>,
    %92 = arith.truncf %90 : vector<16x128xf32> to vector<16x128xbf16>
    %c0_61 = arith.constant 0 : index
    %c0_62 = arith.constant 0 : index
    %93 = vector.load %arg19[%c0_61, %c0_62] : memref<128x128xbf16, #tpu.memory_space<vmem>>, vector<128x128xbf16>
    %cst_63 = arith.constant dense<0.000000e+00> : vector<16x128xf32>
    %94 = tpu.matmul %92, %93, %cst_63 {dimension_numbers = #tpu.dot_dimension_numbers<[1], [0], [0], [1], [0, 0, 1, 1], [], []>} : vector<16x128xbf16>, vector<128x128xbf16>, vector<16x128xf32> -> vector<16x128xf32>
    %c0_64 = arith.constant 0 : index
    %c0_65 = arith.constant 0 : index
    %95 = vector.load %arg20[%c0_64, %c0_65] : memref<1x128xf32, #tpu.memory_space<vmem>>, vector<1x128xf32>
    %96 = vector.broadcast %95 : vector<1x128xf32> to vector<16x128xf32>
    %97 = arith.addf %94, %96 : vector<16x128xf32>
    %cst_66 = arith.constant dense<0xFF800000> : vector<16xf32>
    %98 = vector.multi_reduction <maximumf>, %97, %cst_66 [1] : vector<16x128xf32> to vector<16xf32>
    %99 = vector.shape_cast %98 : vector<16xf32> to vector<16x1xf32>
    %100 = vector.broadcast %99 : vector<16x1xf32> to vector<16x128xf32>
    %101 = arith.subf %97, %100 : vector<16x128xf32>
    %102 = math.exp %101 : vector<16x128xf32>
    %cst_67 = arith.constant dense<0.000000e+00> : vector<16xf32>
    %103 = vector.multi_reduction <add>, %102, %cst_67 [1] : vector<16x128xf32> to vector<16xf32>
    %104 = vector.shape_cast %103 : vector<16xf32> to vector<16x1xf32>
    %105 = math.log %104 : vector<16x1xf32>
    %106 = vector.broadcast %105 : vector<16x1xf32> to vector<16x128xf32>
    %107 = arith.subf %101, %106 : vector<16x128xf32>
    %c0_68 = arith.constant 0 : index
    %c0_69 = arith.constant 0 : index
    %108 = vector.load %arg24[%c0_68, %c0_69] : memref<16x128xf32, #tpu.memory_space<vmem>>, vector<16x128xf32>
    tpu.vector_store %arg24[%c0_68, %c0_69], %107 {strides = array<i32>} : memref<16x128xf32, #tpu.memory_space<vmem>>, vector<16x128xf32>,
    return
  }
  func.func @transform_0(%arg0: i32) -> (i32, i32) {
    %c0_i32 = arith.constant 0 : i32
    %c0_i32_0 = arith.constant 0 : i32
    %c0_i32_1 = arith.constant 0 : i32
    return %c0_i32, %c0_i32_0 : i32, i32
  }
  func.func @transform_1(%arg0: i32) -> (i32, i32) {
    %c0_i32 = arith.constant 0 : i32
    %c0_i32_0 = arith.constant 0 : i32
    %c0_i32_1 = arith.constant 0 : i32
    return %c0_i32, %c0_i32_0 : i32, i32
  }
  func.func @transform_2(%arg0: i32) -> (i32, i32) {
    %c0_i32 = arith.constant 0 : i32
    %c0_i32_0 = arith.constant 0 : i32
    %c0_i32_1 = arith.constant 0 : i32
    return %c0_i32, %c0_i32_0 : i32, i32
  }
  func.func @transform_3(%arg0: i32) -> (i32, i32) {
    %c0_i32 = arith.constant 0 : i32
    %c0_i32_0 = arith.constant 0 : i32
    %c0_i32_1 = arith.constant 0 : i32
    return %c0_i32, %c0_i32_0 : i32, i32
  }
  func.func @transform_4(%arg0: i32) -> (i32, i32) {
    %c0_i32 = arith.constant 0 : i32
    %c0_i32_0 = arith.constant 0 : i32
    %c0_i32_1 = arith.constant 0 : i32
    return %c0_i32, %c0_i32_0 : i32, i32
  }
  func.func @transform_5(%arg0: i32) -> (i32, i32) {
    %c0_i32 = arith.constant 0 : i32
    %c0_i32_0 = arith.constant 0 : i32
    %c0_i32_1 = arith.constant 0 : i32
    return %c0_i32, %c0_i32_0 : i32, i32
  }
  func.func @transform_6(%arg0: i32) -> (i32, i32) {
    %c0_i32 = arith.constant 0 : i32
    %c0_i32_0 = arith.constant 0 : i32
    %c0_i32_1 = arith.constant 0 : i32
    return %c0_i32, %c0_i32_0 : i32, i32
  }
  func.func @transform_7(%arg0: i32) -> (i32, i32) {
    %c0_i32 = arith.constant 0 : i32
    %c0_i32_0 = arith.constant 0 : i32
    %c0_i32_1 = arith.constant 0 : i32
    return %c0_i32, %c0_i32_0 : i32, i32
  }
  func.func @transform_8(%arg0: i32) -> (i32, i32) {
    %c0_i32 = arith.constant 0 : i32
    %c0_i32_0 = arith.constant 0 : i32
    %c0_i32_1 = arith.constant 0 : i32
    return %c0_i32, %c0_i32_0 : i32, i32
  }
  func.func @transform_9(%arg0: i32) -> (i32, i32) {
    %c0_i32 = arith.constant 0 : i32
    %c0_i32_0 = arith.constant 0 : i32
    %c0_i32_1 = arith.constant 0 : i32
    return %c0_i32, %c0_i32_0 : i32, i32
  }
  func.func @transform_10(%arg0: i32) -> (i32, i32) {
    %c0_i32 = arith.constant 0 : i32
    %c0_i32_0 = arith.constant 0 : i32
    %c0_i32_1 = arith.constant 0 : i32
    return %c0_i32, %c0_i32_0 : i32, i32
  }
  func.func @transform_11(%arg0: i32) -> (i32, i32) {
    %c0_i32 = arith.constant 0 : i32
    %c0_i32_0 = arith.constant 0 : i32
    %c0_i32_1 = arith.constant 0 : i32
    return %c0_i32, %c0_i32_0 : i32, i32
  }
  func.func @transform_12(%arg0: i32) -> (i32, i32) {
    %c0_i32 = arith.constant 0 : i32
    %c0_i32_0 = arith.constant 0 : i32
    %c0_i32_1 = arith.constant 0 : i32
    return %c0_i32, %c0_i32_0 : i32, i32
  }
  func.func @transform_13(%arg0: i32) -> (i32, i32) {
    %c0_i32 = arith.constant 0 : i32
    %c0_i32_0 = arith.constant 0 : i32
    %c0_i32_1 = arith.constant 0 : i32
    return %c0_i32, %c0_i32_0 : i32, i32
  }
  func.func @transform_14(%arg0: i32) -> (i32, i32) {
    %c0_i32 = arith.constant 0 : i32
    %c0_i32_0 = arith.constant 0 : i32
    %c0_i32_1 = arith.constant 0 : i32
    return %c0_i32, %c0_i32_0 : i32, i32
  }
  func.func @transform_15(%arg0: i32) -> (i32, i32) {
    %c0_i32 = arith.constant 0 : i32
    %c0_i32_0 = arith.constant 0 : i32
    %c0_i32_1 = arith.constant 0 : i32
    return %c0_i32, %c0_i32_0 : i32, i32
  }
  func.func @transform_16(%arg0: i32) -> (i32, i32) {
    %c0_i32 = arith.constant 0 : i32
    %c0_i32_0 = arith.constant 0 : i32
    %c0_i32_1 = arith.constant 0 : i32
    return %c0_i32, %c0_i32_0 : i32, i32
  }
  func.func @transform_17(%arg0: i32) -> (i32, i32) {
    %c0_i32 = arith.constant 0 : i32
    %c0_i32_0 = arith.constant 0 : i32
    %c0_i32_1 = arith.constant 0 : i32
    return %c0_i32, %c0_i32_0 : i32, i32
  }
  func.func @transform_18(%arg0: i32) -> (i32, i32) {
    %c0_i32 = arith.constant 0 : i32
    %c0_i32_0 = arith.constant 0 : i32
    %c0_i32_1 = arith.constant 0 : i32
    return %c0_i32, %c0_i32_0 : i32, i32
  }
  func.func @transform_19(%arg0: i32) -> (i32, i32) {
    %c0_i32 = arith.constant 0 : i32
    %c0_i32_0 = arith.constant 0 : i32
    %c0_i32_1 = arith.constant 0 : i32
    return %c0_i32, %c0_i32_0 : i32, i32
  }
  func.func @transform_20(%arg0: i32) -> (i32, i32) {
    %c0_i32 = arith.constant 0 : i32
    %c0_i32_0 = arith.constant 0 : i32
    %c0_i32_1 = arith.constant 0 : i32
    return %c0_i32, %c0_i32_0 : i32, i32
  }
  func.func @transform_21(%arg0: i32) -> (i32, i32, i32) {
    %c0_i32 = arith.constant 0 : i32
    %c0_i32_0 = arith.constant 0 : i32
    %c0_i32_1 = arith.constant 0 : i32
    %c0_i32_2 = arith.constant 0 : i32
    return %c0_i32, %c0_i32_0, %c0_i32_1 : i32, i32, i32
  }
  func.func @transform_22(%arg0: i32) -> (i32, i32) {
    %c0_i32 = arith.constant 0 : i32
    %c0_i32_0 = arith.constant 0 : i32
    %c0_i32_1 = arith.constant 0 : i32
    return %c0_i32, %c0_i32_0 : i32, i32
  }
  func.func @transform_23(%arg0: i32) -> (i32, i32) {
    %c0_i32 = arith.constant 0 : i32
    %c0_i32_0 = arith.constant 0 : i32
    %c0_i32_1 = arith.constant 0 : i32
    return %c0_i32, %c0_i32_0 : i32, i32
  }
}

</mosaic_0001>

<llo_original>
// kernel: tpu_custom_call.1
$region0: #{tpu_custom_call.1}
  #allocation0 [shape = 'u32[]', space=smem, size = 0x4, offset = 0x4, fixed_abs, tag = 'smem constant byte address 0x4 - core index']
  #allocation1 [shape = 'u32[144,128]{1,0:T(1,128)}', space=vmem, size = 0x12000, scoped, tag = 'internal scratch']
  %s0 = inlined_call_operand.hbm [shape: bf16[32,128], index: 0, kind: input, shape index: {}]
  %s1 = inlined_call_operand.hbm [shape: bf16[16,32], index: 1, kind: input, shape index: {}]
  %s2 = inlined_call_operand.hbm [shape: bf16[16,16], index: 2, kind: input, shape index: {}]
  %s3 = inlined_call_operand.hbm [shape: bf16[16,128], index: 3, kind: input, shape index: {}]
  %s4 = inlined_call_operand.hbm [shape: bf16[128,128], index: 4, kind: input, shape index: {}]
  %s5 = inlined_call_operand.vmem [shape: f32[1,128], index: 5, kind: input, shape index: {}]
  %s6 = inlined_call_operand.hbm [shape: bf16[128,128], index: 6, kind: input, shape index: {}]
  %s7 = inlined_call_operand.vmem [shape: f32[1,128], index: 7, kind: input, shape index: {}]
  %s8 = inlined_call_operand.hbm [shape: bf16[128,128], index: 8, kind: input, shape index: {}]
  %s9 = inlined_call_operand.hbm [shape: bf16[128,128], index: 9, kind: input, shape index: {}]
  %s10 = inlined_call_operand.vmem [shape: f32[1,128], index: 10, kind: input, shape index: {}]
  %s11 = inlined_call_operand.hbm [shape: bf16[128,128], index: 11, kind: input, shape index: {}]
  %s12 = inlined_call_operand.vmem [shape: f32[1,128], index: 12, kind: input, shape index: {}]
  %s13 = inlined_call_operand.hbm [shape: bf16[128,128], index: 13, kind: input, shape index: {}]
  %s14 = inlined_call_operand.hbm [shape: f32[1,128], index: 14, kind: input, shape index: {}]
  %s15 = inlined_call_operand.hbm [shape: bf16[128,128], index: 15, kind: input, shape index: {}]
  %s16 = inlined_call_operand.hbm [shape: bf16[128,128], index: 16, kind: input, shape index: {}]
  %s17 = inlined_call_operand.hbm [shape: f32[1,128], index: 17, kind: input, shape index: {}]
  %s18 = inlined_call_operand.vmem [shape: bf16[128,128], index: 18, kind: input, shape index: {}]
  %s19 = inlined_call_operand.vmem [shape: f32[1,128], index: 19, kind: input, shape index: {}]
  %s20 = inlined_call_operand.hbm [shape: f32[16,128], index: 20, kind: output, shape index: {0}]
  %s21 = inlined_call_operand.hbm [shape: f32[2,8,8], index: 21, kind: output, shape index: {1}]
  %s22 = inlined_call_operand.hbm [shape: f32[16,128], index: 22, kind: output, shape index: {2}]
  %s23 = inlined_call_operand.hbm [shape: f32[16,128], index: 23, kind: output, shape index: {3}]
  %24 = xla_tuple %s20, %s21, %s22, %s23
  %s25 = sld [smem:[#allocation0]]
  $region170: #{tpu_custom_call.1} parent=0
    _
  %s27 = ssub.s32 1, %s25
  %s28 = scalar_select 0, %s27, %s25
  $region1: #{tpu_custom_call.1} parent=0
    #allocation2 [shape = 'u8[8192]{0}', space=vmem, size = 0x2000, scoped, tag = 'input window, operand 0, single buffered']
    #allocation3 [shape = 's32[1]{0}', space=sflag, size = 0x4, scoped, tag = 'scoped memory for tpu_custom_call.1']
    #allocation4 [shape = 's32[1]{0}', space=sflag, size = 0x4, scoped, tag = 'scoped memory for tpu_custom_call.1']
    #allocation5 [shape = 'u8[4096]{0}', space=vmem, size = 0x1000, scoped, tag = 'input window, operand 1, single buffered']
    #allocation6 [shape = 's32[1]{0}', space=sflag, size = 0x4, scoped, tag = 'scoped memory for tpu_custom_call.1']
    #allocation7 [shape = 'u8[4096]{0}', space=vmem, size = 0x1000, scoped, tag = 'input window, operand 2, single buffered']
    #allocation8 [shape = 'u8[4096]{0}', space=vmem, size = 0x1000, scoped, tag = 'input window, operand 3, single buffered']
    #allocation9 [shape = 's32[1]{0}', space=sflag, size = 0x4, scoped, tag = 'scoped memory for tpu_custom_call.1']
    #allocation10 [shape = 'u8[32768]{0}', space=vmem, size = 0x8000, scoped, tag = 'input window, operand 4, single buffered']
    #allocation11 [shape = 'u8[32768]{0}', space=vmem, size = 0x8000, scoped, tag = 'input window, operand 6, single buffered']
    #allocation12 [shape = 's32[1]{0}', space=sflag, size = 0x4, scoped, tag = 'scoped memory for tpu_custom_call.1']
    #allocation13 [shape = 'u8[32768]{0}', space=vmem, size = 0x8000, scoped, tag = 'input window, operand 8, single buffered']
    #allocation14 [shape = 'u8[32768]{0}', space=vmem, size = 0x8000, scoped, tag = 'input window, operand 9, single buffered']
    #allocation15 [shape = 's32[1]{0}', space=sflag, size = 0x4, scoped, tag = 'scoped memory for tpu_custom_call.1']
    #allocation16 [shape = 'u8[32768]{0}', space=vmem, size = 0x8000, scoped, tag = 'input window, operand 11, single buffered']
    #allocation17 [shape = 'u8[32768]{0}', space=vmem, size = 0x8000, scoped, tag = 'input window, operand 13, single buffered']
    #allocation18 [shape = 's32[1]{0}', space=sflag, size = 0x4, scoped, tag = 'scoped memory for tpu_custom_call.1']
    #allocation19 [shape = 'u8[512]{0}', space=vmem, size = 0x400, scoped, tag = 'input window, operand 14, single buffered']
    #allocation20 [shape = 'u8[32768]{0}', space=vmem, size = 0x8000, scoped, tag = 'input window, operand 15, single buffered']
    #allocation21 [shape = 's32[1]{0}', space=sflag, size = 0x4, scoped, tag = 'scoped memory for tpu_custom_call.1']
    #allocation22 [shape = 'u8[32768]{0}', space=vmem, size = 0x8000, scoped, tag = 'input window, operand 16, single buffered']
    #allocation23 [shape = 'u8[512]{0}', space=vmem, size = 0x400, scoped, tag = 'input window, operand 17, single buffered']
    #allocation24 [shape = 's32[1]{0}', space=sflag, size = 0x4, scoped, tag = 'scoped memory for tpu_custom_call.1']
    #allocation25 [shape = 'u8[8192]{0}', space=vmem, size = 0x2000, scoped, tag = 'output window, operand 0, single buffered']
    #allocation26 [shape = 'u8[8192]{0}', space=vmem, size = 0x2000, scoped, tag = 'output window, operand 1, single buffered']
    #allocation27 [shape = 's32[1]{0}', space=sflag, size = 0x4, scoped, tag = 'scoped memory for tpu_custom_call.1']
    #allocation28 [shape = 'u8[8192]{0}', space=vmem, size = 0x2000, scoped, tag = 'output window, operand 2, single buffered']
    #allocation29 [shape = 'u8[8192]{0}', space=vmem, size = 0x2000, scoped, tag = 'output window, operand 3, single buffered']
    #allocation30 [shape = 's32[1]{0}', space=sflag, size = 0x4, scoped, tag = 'scoped memory for tpu_custom_call.1']
    %29 = vsyncpa [#allocation3], 0
    %30 = vsyncpa [#allocation6], 0
    %31 = vsyncpa [#allocation9], 0
    %32 = vsyncpa [#allocation12], 0
    %33 = vsyncpa [#allocation15], 0
    %34 = vsyncpa [#allocation18], 0
    %35 = vsyncpa [#allocation21], 0
    %36 = vsyncpa [#allocation24], 0
    %37 = vsyncpa [#allocation4], 0
    %38 = vsyncpa [#allocation27], 0
    %39 = vsyncpa [#allocation30], 0
    // Predicated region
    $region2: #{tpu_custom_call.1} parent=1 // pred_check
      _
    $region3: #{tpu_custom_call.1} parent=1 // pred_check_branch
      %41 = sbr.rel (0) target = $region5
    $region4: #{tpu_custom_call.1} parent=1 // pred_region
      %s43 = ssub.s32 256, 256
      %44 = vsyncadd [#allocation3], %s43
      %s45 = sshll.u32 [#allocation2], 4
      %s46 = int_to_ptr.vmem [resolvable:$true] %s45
      %51 = dma.hbm_to_vmem [thread:$0]  %s0, 256, %s46, [#allocation3], 64, 64, 4
    $region5: #{tpu_custom_call.1} parent=1 // pred_fallthru
      _
    // Predicated region
    $region6: #{tpu_custom_call.1} parent=1 // pred_check
      _
    $region7: #{tpu_custom_call.1} parent=1 // pred_check_branch
      %53 = sbr.rel (0) target = $region9
    $region8: #{tpu_custom_call.1} parent=1 // pred_region
      %s55 = ssub.s32 128, 128
      %56 = vsyncadd [#allocation6], %s55
      %s57 = sshll.u32 [#allocation5], 4
      %s58 = int_to_ptr.vmem [resolvable:$true] %s57
      %63 = dma.hbm_to_vmem [thread:$0]  %s1, 128, %s58, [#allocation6], 64, 64, 4
    $region9: #{tpu_custom_call.1} parent=1 // pred_fallthru
      _
    // Predicated region
    $region10: #{tpu_custom_call.1} parent=1 // pred_check
      _
    $region11: #{tpu_custom_call.1} parent=1 // pred_check_branch
      %65 = sbr.rel (0) target = $region13
    $region12: #{tpu_custom_call.1} parent=1 // pred_region
      %s67 = ssub.s32 128, 128
      %68 = vsyncadd [#allocation6], %s67
      %s69 = sshll.u32 [#allocation7], 4
      %s70 = int_to_ptr.vmem [resolvable:$true] %s69
      %75 = dma.hbm_to_vmem [thread:$0]  %s2, 128, %s70, [#allocation6], 64, 64, 4
    $region13: #{tpu_custom_call.1} parent=1 // pred_fallthru
      _
    // Predicated region
    $region14: #{tpu_custom_call.1} parent=1 // pred_check
      _
    $region15: #{tpu_custom_call.1} parent=1 // pred_check_branch
      %77 = sbr.rel (0) target = $region17
    $region16: #{tpu_custom_call.1} parent=1 // pred_region
      %s79 = ssub.s32 128, 128
      %80 = vsyncadd [#allocation9], %s79
      %s81 = sshll.u32 [#allocation8], 4
      %s82 = int_to_ptr.vmem [resolvable:$true] %s81
      %87 = dma.hbm_to_vmem [thread:$0]  %s3, 128, %s82, [#allocation9], 64, 64, 4
    $region17: #{tpu_custom_call.1} parent=1 // pred_fallthru
      _
    // Predicated region
    $region18: #{tpu_custom_call.1} parent=1 // pred_check
      _
    $region19: #{tpu_custom_call.1} parent=1 // pred_check_branch
      %89 = sbr.rel (0) target = $region21
    $region20: #{tpu_custom_call.1} parent=1 // pred_region
      %s91 = ssub.s32 1024, 1024
      %92 = vsyncadd [#allocation9], %s91
      %s93 = sshll.u32 [#allocation10], 4
      %s94 = int_to_ptr.vmem [resolvable:$true] %s93
      %99 = dma.hbm_to_vmem [thread:$0]  %s4, 1024, %s94, [#allocation9], 64, 64, 4
    $region21: #{tpu_custom_call.1} parent=1 // pred_fallthru
      _
    // Predicated region
    $region22: #{tpu_custom_call.1} parent=1 // pred_check
      _
    $region23: #{tpu_custom_call.1} parent=1 // pred_check_branch
      %101 = sbr.rel (0) target = $region25
    $region24: #{tpu_custom_call.1} parent=1 // pred_region
      _
    $region25: #{tpu_custom_call.1} parent=1 // pred_fallthru
      _
    // Predicated region
    $region26: #{tpu_custom_call.1} parent=1 // pred_check
      _
    $region27: #{tpu_custom_call.1} parent=1 // pred_check_branch
      %103 = sbr.rel (0) target = $region29
    $region28: #{tpu_custom_call.1} parent=1 // pred_region
      %s105 = ssub.s32 1024, 1024
      %106 = vsyncadd [#allocation12], %s105
      %s107 = sshll.u32 [#allocation11], 4
      %s108 = int_to_ptr.vmem [resolvable:$true] %s107
      %113 = dma.hbm_to_vmem [thread:$0]  %s6, 1024, %s108, [#allocation12], 64, 64, 4
    $region29: #{tpu_custom_call.1} parent=1 // pred_fallthru
      _
    // Predicated region
    $region30: #{tpu_custom_call.1} parent=1 // pred_check
      _
    $region31: #{tpu_custom_call.1} parent=1 // pred_check_branch
      %115 = sbr.rel (0) target = $region33
    $region32: #{tpu_custom_call.1} parent=1 // pred_region
      _
    $region33: #{tpu_custom_call.1} parent=1 // pred_fallthru
      _
    // Predicated region
    $region34: #{tpu_custom_call.1} parent=1 // pred_check
      _
    $region35: #{tpu_custom_call.1} parent=1 // pred_check_branch
      %117 = sbr.rel (0) target = $region37
    $region36: #{tpu_custom_call.1} parent=1 // pred_region
      %s119 = ssub.s32 1024, 1024
      %120 = vsyncadd [#allocation12], %s119
      %s121 = sshll.u32 [#allocation13], 4
      %s122 = int_to_ptr.vmem [resolvable:$true] %s121
      %127 = dma.hbm_to_vmem [thread:$0]  %s8, 1024, %s122, [#allocation12], 64, 64, 4
    $region37: #{tpu_custom_call.1} parent=1 // pred_fallthru
      _
    // Predicated region
    $region38: #{tpu_custom_call.1} parent=1 // pred_check
      _
    $region39: #{tpu_custom_call.1} parent=1 // pred_check_branch
      %129 = sbr.rel (0) target = $region41
    $region40: #{tpu_custom_call.1} parent=1 // pred_region
      %s131 = ssub.s32 1024, 1024
      %132 = vsyncadd [#allocation15], %s131
      %s133 = sshll.u32 [#allocation14], 4
      %s134 = int_to_ptr.vmem [resolvable:$true] %s133
      %139 = dma.hbm_to_vmem [thread:$0]  %s9, 1024, %s134, [#allocation15], 64, 64, 4
    $region41: #{tpu_custom_call.1} parent=1 // pred_fallthru
      _
    // Predicated region
    $region42: #{tpu_custom_call.1} parent=1 // pred_check
      _
    $region43: #{tpu_custom_call.1} parent=1 // pred_check_branch
      %141 = sbr.rel (0) target = $region45
    $region44: #{tpu_custom_call.1} parent=1 // pred_region
      _
    $region45: #{tpu_custom_call.1} parent=1 // pred_fallthru
      _
    // Predicated region
    $region46: #{tpu_custom_call.1} parent=1 // pred_check
      _
    $region47: #{tpu_custom_call.1} parent=1 // pred_check_branch
      %143 = sbr.rel (0) target = $region49
    $region48: #{tpu_custom_call.1} parent=1 // pred_region
      %s145 = ssub.s32 1024, 1024
      %146 = vsyncadd [#allocation15], %s145
      %s147 = sshll.u32 [#allocation16], 4
      %s148 = int_to_ptr.vmem [resolvable:$true] %s147
      %153 = dma.hbm_to_vmem [thread:$0]  %s11, 1024, %s148, [#allocation15], 64, 64, 4
    $region49: #{tpu_custom_call.1} parent=1 // pred_fallthru
      _
    // Predicated region
    $region50: #{tpu_custom_call.1} parent=1 // pred_check
      _
    $region51: #{tpu_custom_call.1} parent=1 // pred_check_branch
      %155 = sbr.rel (0) target = $region53
    $region52: #{tpu_custom_call.1} parent=1 // pred_region
      _
    $region53: #{tpu_custom_call.1} parent=1 // pred_fallthru
      _
    // Predicated region
    $region54: #{tpu_custom_call.1} parent=1 // pred_check
      _
    $region55: #{tpu_custom_call.1} parent=1 // pred_check_branch
      %157 = sbr.rel (0) target = $region57
    $region56: #{tpu_custom_call.1} parent=1 // pred_region
      %s159 = ssub.s32 1024, 1024
      %160 = vsyncadd [#allocation18], %s159
      %s161 = sshll.u32 [#allocation17], 4
      %s162 = int_to_ptr.vmem [resolvable:$true] %s161
      %167 = dma.hbm_to_vmem [thread:$0]  %s13, 1024, %s162, [#allocation18], 64, 64, 4
    $region57: #{tpu_custom_call.1} parent=1 // pred_fallthru
      _
    // Predicated region
    $region58: #{tpu_custom_call.1} parent=1 // pred_check
      _
    $region59: #{tpu_custom_call.1} parent=1 // pred_check_branch
      %169 = sbr.rel (0) target = $region61
    $region60: #{tpu_custom_call.1} parent=1 // pred_region
      %s171 = ssub.s32 16, 16
      %172 = vsyncadd [#allocation18], %s171
      %s174 = sshll.u32 [#allocation19], 4
      %s175 = int_to_ptr.vmem [resolvable:$true] %s174
      %177 = dma.hbm_to_vmem [thread:$0]  %s14, 16, %s175, [#allocation18]
    $region61: #{tpu_custom_call.1} parent=1 // pred_fallthru
      _
    // Predicated region
    $region62: #{tpu_custom_call.1} parent=1 // pred_check
      _
    $region63: #{tpu_custom_call.1} parent=1 // pred_check_branch
      %179 = sbr.rel (0) target = $region65
    $region64: #{tpu_custom_call.1} parent=1 // pred_region
      %s181 = ssub.s32 1024, 1024
      %182 = vsyncadd [#allocation21], %s181
      %s183 = sshll.u32 [#allocation20], 4
      %s184 = int_to_ptr.vmem [resolvable:$true] %s183
      %189 = dma.hbm_to_vmem [thread:$0]  %s15, 1024, %s184, [#allocation21], 64, 64, 4
    $region65: #{tpu_custom_call.1} parent=1 // pred_fallthru
      _
    // Predicated region
    $region66: #{tpu_custom_call.1} parent=1 // pred_check
      _
    $region67: #{tpu_custom_call.1} parent=1 // pred_check_branch
      %191 = sbr.rel (0) target = $region69
    $region68: #{tpu_custom_call.1} parent=1 // pred_region
      %s193 = ssub.s32 1024, 1024
      %194 = vsyncadd [#allocation21], %s193
      %s195 = sshll.u32 [#allocation22], 4
      %s196 = int_to_ptr.vmem [resolvable:$true] %s195
      %201 = dma.hbm_to_vmem [thread:$0]  %s16, 1024, %s196, [#allocation21], 64, 64, 4
    $region69: #{tpu_custom_call.1} parent=1 // pred_fallthru
      _
    // Predicated region
    $region70: #{tpu_custom_call.1} parent=1 // pred_check
      _
    $region71: #{tpu_custom_call.1} parent=1 // pred_check_branch
      %203 = sbr.rel (0) target = $region73
    $region72: #{tpu_custom_call.1} parent=1 // pred_region
      %s205 = ssub.s32 16, 16
      %206 = vsyncadd [#allocation24], %s205
      %s208 = sshll.u32 [#allocation23], 4
      %s209 = int_to_ptr.vmem [resolvable:$true] %s208
      %211 = dma.hbm_to_vmem [thread:$0]  %s17, 16, %s209, [#allocation24]
    $region73: #{tpu_custom_call.1} parent=1 // pred_fallthru
      _
    // Predicated region
    $region74: #{tpu_custom_call.1} parent=1 // pred_check
      _
    $region75: #{tpu_custom_call.1} parent=1 // pred_check_branch
      %213 = sbr.rel (0) target = $region77
    $region76: #{tpu_custom_call.1} parent=1 // pred_region
      _
    $region77: #{tpu_custom_call.1} parent=1 // pred_fallthru
      _
    // Predicated region
    $region78: #{tpu_custom_call.1} parent=1 // pred_check
      _
    $region79: #{tpu_custom_call.1} parent=1 // pred_check_branch
      %215 = sbr.rel (0) target = $region81
    $region80: #{tpu_custom_call.1} parent=1 // pred_region
      _
    $region81: #{tpu_custom_call.1} parent=1 // pred_fallthru
      _
    // Predicated region
    $region82: #{tpu_custom_call.1} parent=1 // pred_check
      _
    $region83: #{tpu_custom_call.1} parent=1 // pred_check_branch
      %217 = sbr.rel (0) target = $region85
    $region84: #{tpu_custom_call.1} parent=1 // pred_region
      %218 = dma.done [#allocation3], 256
    $region85: #{tpu_custom_call.1} parent=1 // pred_fallthru
      _
    // Predicated region
    $region86: #{tpu_custom_call.1} parent=1 // pred_check
      _
    $region87: #{tpu_custom_call.1} parent=1 // pred_check_branch
      %220 = sbr.rel (0) target = $region89
    $region88: #{tpu_custom_call.1} parent=1 // pred_region
      %221 = dma.done [#allocation6], 128
    $region89: #{tpu_custom_call.1} parent=1 // pred_fallthru
      _
    // Predicated region
    $region90: #{tpu_custom_call.1} parent=1 // pred_check
      _
    $region91: #{tpu_custom_call.1} parent=1 // pred_check_branch
      %223 = sbr.rel (0) target = $region93
    $region92: #{tpu_custom_call.1} parent=1 // pred_region
      %224 = dma.done [#allocation6], 128
    $region93: #{tpu_custom_call.1} parent=1 // pred_fallthru
      _
    // Predicated region
    $region94: #{tpu_custom_call.1} parent=1 // pred_check
      _
    $region95: #{tpu_custom_call.1} parent=1 // pred_check_branch
      %226 = sbr.rel (0) target = $region97
    $region96: #{tpu_custom_call.1} parent=1 // pred_region
      %227 = dma.done [#allocation9], 128
    $region97: #{tpu_custom_call.1} parent=1 // pred_fallthru
      _
    // Predicated region
    $region98: #{tpu_custom_call.1} parent=1 // pred_check
      _
    $region99: #{tpu_custom_call.1} parent=1 // pred_check_branch
      %229 = sbr.rel (0) target = $region101
    $region100: #{tpu_custom_call.1} parent=1 // pred_region
      %230 = dma.done [#allocation9], 1024
    $region101: #{tpu_custom_call.1} parent=1 // pred_fallthru
      _
    // Predicated region
    $region102: #{tpu_custom_call.1} parent=1 // pred_check
      _
    $region103: #{tpu_custom_call.1} parent=1 // pred_check_branch
      %232 = sbr.rel (0) target = $region105
    $region104: #{tpu_custom_call.1} parent=1 // pred_region
      %233 = dma.done [#allocation12], 1024
    $region105: #{tpu_custom_call.1} parent=1 // pred_fallthru
      _
    // Predicated region
    $region106: #{tpu_custom_call.1} parent=1 // pred_check
      _
    $region107: #{tpu_custom_call.1} parent=1 // pred_check_branch
      %235 = sbr.rel (0) target = $region109
    $region108: #{tpu_custom_call.1} parent=1 // pred_region
      %236 = dma.done [#allocation12], 1024
    $region109: #{tpu_custom_call.1} parent=1 // pred_fallthru
      _
    // Predicated region
    $region110: #{tpu_custom_call.1} parent=1 // pred_check
      _
    $region111: #{tpu_custom_call.1} parent=1 // pred_check_branch
      %238 = sbr.rel (0) target = $region113
    $region112: #{tpu_custom_call.1} parent=1 // pred_region
      %239 = dma.done [#allocation15], 1024
    $region113: #{tpu_custom_call.1} parent=1 // pred_fallthru
      _
    // Predicated region
    $region114: #{tpu_custom_call.1} parent=1 // pred_check
      _
    $region115: #{tpu_custom_call.1} parent=1 // pred_check_branch
      %241 = sbr.rel (0) target = $region117
    $region116: #{tpu_custom_call.1} parent=1 // pred_region
      %242 = dma.done [#allocation15], 1024
    $region117: #{tpu_custom_call.1} parent=1 // pred_fallthru
      _
    // Predicated region
    $region118: #{tpu_custom_call.1} parent=1 // pred_check
      _
    $region119: #{tpu_custom_call.1} parent=1 // pred_check_branch
      %244 = sbr.rel (0) target = $region121
    $region120: #{tpu_custom_call.1} parent=1 // pred_region
      %245 = dma.done [#allocation18], 1024
    $region121: #{tpu_custom_call.1} parent=1 // pred_fallthru
      _
    // Predicated region
    $region122: #{tpu_custom_call.1} parent=1 // pred_check
      _
    $region123: #{tpu_custom_call.1} parent=1 // pred_check_branch
      %247 = sbr.rel (0) target = $region125
    $region124: #{tpu_custom_call.1} parent=1 // pred_region
      %248 = dma.done [#allocation18], 16
    $region125: #{tpu_custom_call.1} parent=1 // pred_fallthru
      _
    // Predicated region
    $region126: #{tpu_custom_call.1} parent=1 // pred_check
      _
    $region127: #{tpu_custom_call.1} parent=1 // pred_check_branch
      %250 = sbr.rel (0) target = $region129
    $region128: #{tpu_custom_call.1} parent=1 // pred_region
      %251 = dma.done [#allocation21], 1024
    $region129: #{tpu_custom_call.1} parent=1 // pred_fallthru
      _
    // Predicated region
    $region130: #{tpu_custom_call.1} parent=1 // pred_check
      _
    $region131: #{tpu_custom_call.1} parent=1 // pred_check_branch
      %253 = sbr.rel (0) target = $region133
    $region132: #{tpu_custom_call.1} parent=1 // pred_region
      %254 = dma.done [#allocation21], 1024
    $region133: #{tpu_custom_call.1} parent=1 // pred_fallthru
      _
    // Predicated region
    $region134: #{tpu_custom_call.1} parent=1 // pred_check
      _
    $region135: #{tpu_custom_call.1} parent=1 // pred_check_branch
      %256 = sbr.rel (0) target = $region137
    $region136: #{tpu_custom_call.1} parent=1 // pred_region
      %257 = dma.done [#allocation24], 16
    $region137: #{tpu_custom_call.1} parent=1 // pred_fallthru
      _
    %v259 = vld [vmem:[#allocation2] sm:$0xf]
    %v260 = vld [vmem:[#allocation2 + $0x4] sm:$0xf]
    %v261 = vld [vmem:[#allocation2 + $0x8] sm:$0xf]
    %v262 = vld [vmem:[#allocation2 + $0xc] sm:$0xf]
    %v263 = vld [vmem:[#allocation10] sm:$0xf]
    %v264 = vld [vmem:[#allocation10 + $0x4] sm:$0xf]
    %v265 = vld [vmem:[#allocation10 + $0x8] sm:$0xf]
    %v266 = vld [vmem:[#allocation10 + $0xc] sm:$0xf]
    %v267 = vld [vmem:[#allocation10 + $0x10] sm:$0xf]
    %v268 = vld [vmem:[#allocation10 + $0x14] sm:$0xf]
    %v269 = vld [vmem:[#allocation10 + $0x18] sm:$0xf]
    %v270 = vld [vmem:[#allocation10 + $0x1c] sm:$0xf]
    %v271 = vld [vmem:[#allocation10 + $0x20] sm:$0xf]
    %v272 = vld [vmem:[#allocation10 + $0x24] sm:$0xf]
    %v273 = vld [vmem:[#allocation10 + $0x28] sm:$0xf]
    %v274 = vld [vmem:[#allocation10 + $0x2c] sm:$0xf]
    %v275 = vld [vmem:[#allocation10 + $0x30] sm:$0xf]
    %v276 = vld [vmem:[#allocation10 + $0x34] sm:$0xf]
    %v277 = vld [vmem:[#allocation10 + $0x38] sm:$0xf]
    %v278 = vld [vmem:[#allocation10 + $0x3c] sm:$0xf]
    %v279 = vld [vmem:[%s5] sm:$0x1]
    %v281 = vlaneseq
    %v282 = vshrl.u32 %v281, 7
    %v283 = vsub.s32 0, %v282
    %v284 = vrot.slane %v279, %v283
    %v290 = vunpack.c.l.b16 %v259
    %v291 = vunpack.c.l.b16 %v260
    %v292 = vunpack.c.l.b16 %v261
    %v293 = vunpack.c.l.b16 %v262
    %v294 = vpack.c.b16 %v291, %v290
    %v295 = vpack.c.b16 %v293, %v292
    %v314 = vunpack.c.l.b16 %v263
    %v315 = vunpack.c.l.b16 %v264
    %v316 = vunpack.c.l.b16 %v265
    %v317 = vunpack.c.l.b16 %v266
    %v318 = vunpack.c.l.b16 %v267
    %v319 = vunpack.c.l.b16 %v268
    %v320 = vunpack.c.l.b16 %v269
    %v321 = vunpack.c.l.b16 %v270
    %v322 = vunpack.c.l.b16 %v271
    %v323 = vunpack.c.l.b16 %v272
    %v324 = vunpack.c.l.b16 %v273
    %v325 = vunpack.c.l.b16 %v274
    %v326 = vunpack.c.l.b16 %v275
    %v327 = vunpack.c.l.b16 %v276
    %v328 = vunpack.c.l.b16 %v277
    %v329 = vunpack.c.l.b16 %v278
    %v330 = vpack.c.b16 %v315, %v314
    %v331 = vpack.c.b16 %v317, %v316
    %v332 = vpack.c.b16 %v319, %v318
    %v333 = vpack.c.b16 %v321, %v320
    %v334 = vpack.c.b16 %v323, %v322
    %v335 = vpack.c.b16 %v325, %v324
    %v336 = vpack.c.b16 %v327, %v326
    %v337 = vpack.c.b16 %v329, %v328
    %346 = vmatprep.subr.bf16.mxu0 0
    %347 = vmatpush1.bf16.msra.mxu0 %v330
    %348 = vmatprep.subr.bf16.mxu0 0
    %349 = vmatpush1.bf16.msra.mxu0 %v331
    %350 = vmatprep.subr.bf16.mxu0 0
    %351 = vmatpush1.bf16.msra.mxu0 %v332
    %352 = vmatprep.subr.bf16.mxu0 0
    %353 = vmatpush1.bf16.msra.mxu0 %v333
    %354 = vmatprep.subr.bf16.mxu0 0
    %355 = vmatpush1.bf16.msra.mxu0 %v334
    %356 = vmatprep.subr.bf16.mxu0 0
    %357 = vmatpush1.bf16.msra.mxu0 %v335
    %358 = vmatprep.subr.bf16.mxu0 0
    %359 = vmatpush1.bf16.msra.mxu0 %v336
    %360 = vmatprep.subr.bf16.mxu0 0
    %361 = vmatpush1.bf16.msra.mxu0 %v337
    %362 = vmatprep.subr.bf16.mxu0 0
    %363 = vmatpush1.bf16.msra.mxu0 0
    %364 = vmatprep.subr.bf16.mxu0 0
    %365 = vmatpush1.bf16.msra.mxu0 0
    %366 = vmatprep.subr.bf16.mxu0 0
    %367 = vmatpush1.bf16.msra.mxu0 0
    %368 = vmatprep.subr.bf16.mxu0 0
    %369 = vmatpush1.bf16.msra.mxu0 0
    %370 = vmatprep.subr.bf16.mxu0 0
    %371 = vmatpush1.bf16.msra.mxu0 0
    %372 = vmatprep.subr.bf16.mxu0 0
    %373 = vmatpush1.bf16.msra.mxu0 0
    %374 = vmatprep.subr.bf16.mxu0 0
    %375 = vmatpush1.bf16.msra.mxu0 0
    %376 = vmatprep.subr.bf16.mxu0 0
    %377 = vmatpush1.bf16.msra.mxu0 0
    %378 = vmatprep.mubr.bf16.mxu0 0
    %379 = vmatmul.mubr.bf16.gmra.mrb[0].mxu0 %v294
    %v380 = vpop.f32.mrb[0].mxu0
    %v381 = vadd.f32 %v284, %v380
    %v382 = vpop.f32.mrb[0].mxu0
    %v383 = vpop.f32.mrb[0].mxu0
    %v384 = vadd.f32 %v284, %v383
    %v385 = vpop.f32.mrb[0].mxu0
    %386 = vmatprep.mubr.bf16.mxu0 0
    %387 = vmatmul.mubr.bf16.gmra.mrb[0].mxu0 %v295
    %v388 = vpop.f32.mrb[0].mxu0
    %v389 = vadd.f32 %v284, %v388
    %v390 = vpop.f32.mrb[0].mxu0
    %v391 = vpop.f32.mrb[0].mxu0
    %v392 = vadd.f32 %v284, %v391
    %v393 = vpop.f32.mrb[0].mxu0
    %394 = vdwg.mxu0
    %v395 = vtanh.pop %v381
    %v396 = vtanh.pop %v384
    %v397 = vtanh.pop %v389
    %v398 = vtanh.pop %v392
    %v399 = vadd.f32 %v395, %v396
    %v400 = vrot.slane %v399, 4
    %v401 = vadd.f32 %v399, %v400
    %v402 = vrot.slane %v401, 2
    %v403 = vadd.f32 %v401, %v402
    %v404 = vrot.slane %v403, 1
    %v405 = vadd.f32 %v403, %v404
    %v406 = vadd.f32 %v397, %v398
    %v407 = vrot.slane %v406, 4
    %v408 = vadd.f32 %v406, %v407
    %v409 = vrot.slane %v408, 2
    %v410 = vadd.f32 %v408, %v409
    %v411 = vrot.slane %v410, 1
    %v412 = vadd.f32 %v410, %v411
    %v413 = vrcp.pop 16.0
    %v414 = vmul.f32 %v405, %v413
    %v415 = vmul.f32 %v412, %v413
    %v416 = vld [vmem:[#allocation5] sm:$0xf]
    %v417 = vld [vmem:[#allocation5 + $0x4] sm:$0xf]
    %v418 = vpack.c.bf16 %v396, %v395
    %v419 = vpack.c.bf16 %v398, %v397
    %v422 = vunpack.c.l.b16 %v416
    %v423 = vunpack.c.l.b16 %v417
    %v424 = vpack.c.b16 %v423, %v422
    %vm425 = vcmask 261120
    %v427 = vsel %vm425, %v424, 0
    %429 = vmatprep.subr.bf16.mxu0 0
    %430 = vmatpush1.bf16.msra.mxu0 %v418
    %431 = vmatprep.subr.bf16.mxu0 0
    %432 = vmatpush1.bf16.msra.mxu0 %v419
    %433 = vmatprep.subr.bf16.mxu0 0
    %434 = vmatpush1.bf16.msra.mxu0 0
    %435 = vmatprep.subr.bf16.mxu0 0
    %436 = vmatpush1.bf16.msra.mxu0 0
    %437 = vmatprep.subr.bf16.mxu0 0
    %438 = vmatpush1.bf16.msra.mxu0 0
    %439 = vmatprep.subr.bf16.mxu0 0
    %440 = vmatpush1.bf16.msra.mxu0 0
    %441 = vmatprep.subr.bf16.mxu0 0
    %442 = vmatpush1.bf16.msra.mxu0 0
    %443 = vmatprep.subr.bf16.mxu0 0
    %444 = vmatpush1.bf16.msra.mxu0 0
    %445 = vmatprep.subr.bf16.mxu0 0
    %446 = vmatpush1.bf16.msra.mxu0 0
    %447 = vmatprep.subr.bf16.mxu0 0
    %448 = vmatpush1.bf16.msra.mxu0 0
    %449 = vmatprep.subr.bf16.mxu0 0
    %450 = vmatpush1.bf16.msra.mxu0 0
    %451 = vmatprep.subr.bf16.mxu0 0
    %452 = vmatpush1.bf16.msra.mxu0 0
    %453 = vmatprep.subr.bf16.mxu0 0
    %454 = vmatpush1.bf16.msra.mxu0 0
    %455 = vmatprep.subr.bf16.mxu0 0
    %456 = vmatpush1.bf16.msra.mxu0 0
    %457 = vmatprep.subr.bf16.mxu0 0
    %458 = vmatpush1.bf16.msra.mxu0 0
    %459 = vmatprep.subr.bf16.mxu0 0
    %460 = vmatpush1.bf16.msra.mxu0 0
    %461 = vmatprep.mubr.bf16.mxu0 0
    %462 = vmatmul.mubr.bf16.gmra.mrb[0].mxu0 %v427
    %v463 = vpop.f32.mrb[0].mxu0
    %v464 = vadd.f32 0.0, %v463
    %v465 = vpop.f32.mrb[0].mxu0
    %v466 = vpop.f32.mrb[0].mxu0
    %v467 = vadd.f32 0.0, %v466
    %v468 = vpop.f32.mrb[0].mxu0
    %469 = vdwg.mxu0
    %v470 = vpack.c.bf16 %v467, %v464
    %v471 = vld [vmem:[#allocation11] sm:$0xf]
    %v472 = vld [vmem:[#allocation11 + $0x4] sm:$0xf]
    %v473 = vld [vmem:[#allocation11 + $0x8] sm:$0xf]
    %v474 = vld [vmem:[#allocation11 + $0xc] sm:$0xf]
    %v475 = vld [vmem:[#allocation11 + $0x10] sm:$0xf]
    %v476 = vld [vmem:[#allocation11 + $0x14] sm:$0xf]
    %v477 = vld [vmem:[#allocation11 + $0x18] sm:$0xf]
    %v478 = vld [vmem:[#allocation11 + $0x1c] sm:$0xf]
    %v479 = vld [vmem:[#allocation11 + $0x20] sm:$0xf]
    %v480 = vld [vmem:[#allocation11 + $0x24] sm:$0xf]
    %v481 = vld [vmem:[#allocation11 + $0x28] sm:$0xf]
    %v482 = vld [vmem:[#allocation11 + $0x2c] sm:$0xf]
    %v483 = vld [vmem:[#allocation11 + $0x30] sm:$0xf]
    %v484 = vld [vmem:[#allocation11 + $0x34] sm:$0xf]
    %v485 = vld [vmem:[#allocation11 + $0x38] sm:$0xf]
    %v486 = vld [vmem:[#allocation11 + $0x3c] sm:$0xf]
    %v487 = vld [vmem:[%s7] sm:$0x1]
    %v489 = vlaneseq
    %v490 = vshrl.u32 %v489, 7
    %v491 = vsub.s32 0, %v490
    %v492 = vrot.slane %v487, %v491
    %v510 = vunpack.c.l.b16 %v471
    %v511 = vunpack.c.l.b16 %v472
    %v512 = vunpack.c.l.b16 %v473
    %v513 = vunpack.c.l.b16 %v474
    %v514 = vunpack.c.l.b16 %v475
    %v515 = vunpack.c.l.b16 %v476
    %v516 = vunpack.c.l.b16 %v477
    %v517 = vunpack.c.l.b16 %v478
    %v518 = vunpack.c.l.b16 %v479
    %v519 = vunpack.c.l.b16 %v480
    %v520 = vunpack.c.l.b16 %v481
    %v521 = vunpack.c.l.b16 %v482
    %v522 = vunpack.c.l.b16 %v483
    %v523 = vunpack.c.l.b16 %v484
    %v524 = vunpack.c.l.b16 %v485
    %v525 = vunpack.c.l.b16 %v486
    %v526 = vpack.c.b16 %v511, %v510
    %v527 = vpack.c.b16 %v513, %v512
    %v528 = vpack.c.b16 %v515, %v514
    %v529 = vpack.c.b16 %v517, %v516
    %v530 = vpack.c.b16 %v519, %v518
    %v531 = vpack.c.b16 %v521, %v520
    %v532 = vpack.c.b16 %v523, %v522
    %v533 = vpack.c.b16 %v525, %v524
    %542 = vmatprep.subr.bf16.mxu0 0
    %543 = vmatpush1.bf16.msra.mxu0 %v526
    %544 = vmatprep.subr.bf16.mxu0 0
    %545 = vmatpush1.bf16.msra.mxu0 %v527
    %546 = vmatprep.subr.bf16.mxu0 0
    %547 = vmatpush1.bf16.msra.mxu0 %v528
    %548 = vmatprep.subr.bf16.mxu0 0
    %549 = vmatpush1.bf16.msra.mxu0 %v529
    %550 = vmatprep.subr.bf16.mxu0 0
    %551 = vmatpush1.bf16.msra.mxu0 %v530
    %552 = vmatprep.subr.bf16.mxu0 0
    %553 = vmatpush1.bf16.msra.mxu0 %v531
    %554 = vmatprep.subr.bf16.mxu0 0
    %555 = vmatpush1.bf16.msra.mxu0 %v532
    %556 = vmatprep.subr.bf16.mxu0 0
    %557 = vmatpush1.bf16.msra.mxu0 %v533
    %558 = vmatprep.subr.bf16.mxu0 0
    %559 = vmatpush1.bf16.msra.mxu0 0
    %560 = vmatprep.subr.bf16.mxu0 0
    %561 = vmatpush1.bf16.msra.mxu0 0
    %562 = vmatprep.subr.bf16.mxu0 0
    %563 = vmatpush1.bf16.msra.mxu0 0
    %564 = vmatprep.subr.bf16.mxu0 0
    %565 = vmatpush1.bf16.msra.mxu0 0
    %566 = vmatprep.subr.bf16.mxu0 0
    %567 = vmatpush1.bf16.msra.mxu0 0
    %568 = vmatprep.subr.bf16.mxu0 0
    %569 = vmatpush1.bf16.msra.mxu0 0
    %570 = vmatprep.subr.bf16.mxu0 0
    %571 = vmatpush1.bf16.msra.mxu0 0
    %572 = vmatprep.subr.bf16.mxu0 0
    %573 = vmatpush1.bf16.msra.mxu0 0
    %574 = vmatprep.mubr.bf16.mxu0 0
    %575 = vmatmul.mubr.bf16.gmra.mrb[0].mxu0 %v470
    %v576 = vpop.f32.mrb[0].mxu0
    %v577 = vadd.f32 %v492, %v576
    %v578 = vpop.f32.mrb[0].mxu0
    %v579 = vpop.f32.mrb[0].mxu0
    %v580 = vadd.f32 %v492, %v579
    %v581 = vpop.f32.mrb[0].mxu0
    %582 = vdwg.mxu0
    %v583 = vmax.f32 %v577, 0.0
    %v584 = vmax.f32 %v580, 0.0
    %v585 = vld [vmem:[#allocation7] sm:$0xf]
    %v586 = vld [vmem:[#allocation7 + $0x4] sm:$0xf]
    %v587 = vpack.c.bf16 %v584, %v583
    %v590 = vunpack.c.l.b16 %v585
    %v591 = vunpack.c.l.b16 %v586
    %v592 = vpack.c.b16 %v591, %v590
    %vm593 = vcmask 130048
    %v595 = vsel %vm593, %v592, 0
    %597 = vmatprep.subr.bf16.mxu0 0
    %598 = vmatpush1.bf16.msra.mxu0 %v587
    %599 = vmatprep.subr.bf16.mxu0 0
    %600 = vmatpush1.bf16.msra.mxu0 0
    %601 = vmatprep.subr.bf16.mxu0 0
    %602 = vmatpush1.bf16.msra.mxu0 0
    %603 = vmatprep.subr.bf16.mxu0 0
    %604 = vmatpush1.bf16.msra.mxu0 0
    %605 = vmatprep.subr.bf16.mxu0 0
    %606 = vmatpush1.bf16.msra.mxu0 0
    %607 = vmatprep.subr.bf16.mxu0 0
    %608 = vmatpush1.bf16.msra.mxu0 0
    %609 = vmatprep.subr.bf16.mxu0 0
    %610 = vmatpush1.bf16.msra.mxu0 0
    %611 = vmatprep.subr.bf16.mxu0 0
    %612 = vmatpush1.bf16.msra.mxu0 0
    %613 = vmatprep.subr.bf16.mxu0 0
    %614 = vmatpush1.bf16.msra.mxu0 0
    %615 = vmatprep.subr.bf16.mxu0 0
    %616 = vmatpush1.bf16.msra.mxu0 0
    %617 = vmatprep.subr.bf16.mxu0 0
    %618 = vmatpush1.bf16.msra.mxu0 0
    %619 = vmatprep.subr.bf16.mxu0 0
    %620 = vmatpush1.bf16.msra.mxu0 0
    %621 = vmatprep.subr.bf16.mxu0 0
    %622 = vmatpush1.bf16.msra.mxu0 0
    %623 = vmatprep.subr.bf16.mxu0 0
    %624 = vmatpush1.bf16.msra.mxu0 0
    %625 = vmatprep.subr.bf16.mxu0 0
    %626 = vmatpush1.bf16.msra.mxu0 0
    %627 = vmatprep.subr.bf16.mxu0 0
    %628 = vmatpush1.bf16.msra.mxu0 0
    %629 = vmatprep.mubr.bf16.mxu0 0
    %630 = vmatmul.mubr.bf16.gmra.mrb[0].mxu0 %v595
    %v631 = vpop.f32.mrb[0].mxu0
    %v632 = vadd.f32 0.0, %v631
    %v633 = vpop.f32.mrb[0].mxu0
    %v634 = vpop.f32.mrb[0].mxu0
    %v635 = vadd.f32 0.0, %v634
    %v636 = vpop.f32.mrb[0].mxu0
    %637 = vdwg.mxu0
    %v638 = vpack.c.bf16 %v635, %v632
    %v639 = vld [vmem:[#allocation13] sm:$0xf]
    %v640 = vld [vmem:[#allocation13 + $0x4] sm:$0xf]
    %v641 = vld [vmem:[#allocation13 + $0x8] sm:$0xf]
    %v642 = vld [vmem:[#allocation13 + $0xc] sm:$0xf]
    %v643 = vld [vmem:[#allocation13 + $0x10] sm:$0xf]
    %v644 = vld [vmem:[#allocation13 + $0x14] sm:$0xf]
    %v645 = vld [vmem:[#allocation13 + $0x18] sm:$0xf]
    %v646 = vld [vmem:[#allocation13 + $0x1c] sm:$0xf]
    %v647 = vld [vmem:[#allocation13 + $0x20] sm:$0xf]
    %v648 = vld [vmem:[#allocation13 + $0x24] sm:$0xf]
    %v649 = vld [vmem:[#allocation13 + $0x28] sm:$0xf]
    %v650 = vld [vmem:[#allocation13 + $0x2c] sm:$0xf]
    %v651 = vld [vmem:[#allocation13 + $0x30] sm:$0xf]
    %v652 = vld [vmem:[#allocation13 + $0x34] sm:$0xf]
    %v653 = vld [vmem:[#allocation13 + $0x38] sm:$0xf]
    %v654 = vld [vmem:[#allocation13 + $0x3c] sm:$0xf]
    %v671 = vunpack.c.l.b16 %v639
    %v672 = vunpack.c.l.b16 %v640
    %v673 = vunpack.c.l.b16 %v641
    %v674 = vunpack.c.l.b16 %v642
    %v675 = vunpack.c.l.b16 %v643
    %v676 = vunpack.c.l.b16 %v644
    %v677 = vunpack.c.l.b16 %v645
    %v678 = vunpack.c.l.b16 %v646
    %v679 = vunpack.c.l.b16 %v647
    %v680 = vunpack.c.l.b16 %v648
    %v681 = vunpack.c.l.b16 %v649
    %v682 = vunpack.c.l.b16 %v650
    %v683 = vunpack.c.l.b16 %v651
    %v684 = vunpack.c.l.b16 %v652
    %v685 = vunpack.c.l.b16 %v653
    %v686 = vunpack.c.l.b16 %v654
    %v687 = vpack.c.b16 %v672, %v671
    %v688 = vpack.c.b16 %v674, %v673
    %v689 = vpack.c.b16 %v676, %v675
    %v690 = vpack.c.b16 %v678, %v677
    %v691 = vpack.c.b16 %v680, %v679
    %v692 = vpack.c.b16 %v682, %v681
    %v693 = vpack.c.b16 %v684, %v683
    %v694 = vpack.c.b16 %v686, %v685
    %703 = vmatprep.subr.bf16.mxu0 0
    %704 = vmatpush1.bf16.msra.mxu0 %v687
    %705 = vmatprep.subr.bf16.mxu0 0
    %706 = vmatpush1.bf16.msra.mxu0 %v688
    %707 = vmatprep.subr.bf16.mxu0 0
    %708 = vmatpush1.bf16.msra.mxu0 %v689
    %709 = vmatprep.subr.bf16.mxu0 0
    %710 = vmatpush1.bf16.msra.mxu0 %v690
    %711 = vmatprep.subr.bf16.mxu0 0
    %712 = vmatpush1.bf16.msra.mxu0 %v691
    %713 = vmatprep.subr.bf16.mxu0 0
    %714 = vmatpush1.bf16.msra.mxu0 %v692
    %715 = vmatprep.subr.bf16.mxu0 0
    %716 = vmatpush1.bf16.msra.mxu0 %v693
    %717 = vmatprep.subr.bf16.mxu0 0
    %718 = vmatpush1.bf16.msra.mxu0 %v694
    %719 = vmatprep.subr.bf16.mxu0 0
    %720 = vmatpush1.bf16.msra.mxu0 0
    %721 = vmatprep.subr.bf16.mxu0 0
    %722 = vmatpush1.bf16.msra.mxu0 0
    %723 = vmatprep.subr.bf16.mxu0 0
    %724 = vmatpush1.bf16.msra.mxu0 0
    %725 = vmatprep.subr.bf16.mxu0 0
    %726 = vmatpush1.bf16.msra.mxu0 0
    %727 = vmatprep.subr.bf16.mxu0 0
    %728 = vmatpush1.bf16.msra.mxu0 0
    %729 = vmatprep.subr.bf16.mxu0 0
    %730 = vmatpush1.bf16.msra.mxu0 0
    %731 = vmatprep.subr.bf16.mxu0 0
    %732 = vmatpush1.bf16.msra.mxu0 0
    %733 = vmatprep.subr.bf16.mxu0 0
    %734 = vmatpush1.bf16.msra.mxu0 0
    %735 = vmatprep.mubr.bf16.mxu0 0
    %736 = vmatmul.mubr.bf16.gmra.mrb[0].mxu0 %v638
    %v737 = vpop.f32.mrb[0].mxu0
    %v738 = vadd.f32 0.0, %v737
    %v739 = vpop.f32.mrb[0].mxu0
    %v740 = vpop.f32.mrb[0].mxu0
    %v741 = vadd.f32 0.0, %v740
    %v742 = vpop.f32.mrb[0].mxu0
    %743 = vdwg.mxu0
    %v744 = vmax.f32 %v738, 0.0
    %v745 = vmax.f32 %v741, 0.0
    %v746 = vpack.c.bf16 %v745, %v744
    %v747 = vld [vmem:[#allocation14] sm:$0xf]
    %v748 = vld [vmem:[#allocation14 + $0x4] sm:$0xf]
    %v749 = vld [vmem:[#allocation14 + $0x8] sm:$0xf]
    %v750 = vld [vmem:[#allocation14 + $0xc] sm:$0xf]
    %v751 = vld [vmem:[#allocation14 + $0x10] sm:$0xf]
    %v752 = vld [vmem:[#allocation14 + $0x14] sm:$0xf]
    %v753 = vld [vmem:[#allocation14 + $0x18] sm:$0xf]
    %v754 = vld [vmem:[#allocation14 + $0x1c] sm:$0xf]
    %v755 = vld [vmem:[#allocation14 + $0x20] sm:$0xf]
    %v756 = vld [vmem:[#allocation14 + $0x24] sm:$0xf]
    %v757 = vld [vmem:[#allocation14 + $0x28] sm:$0xf]
    %v758 = vld [vmem:[#allocation14 + $0x2c] sm:$0xf]
    %v759 = vld [vmem:[#allocation14 + $0x30] sm:$0xf]
    %v760 = vld [vmem:[#allocation14 + $0x34] sm:$0xf]
    %v761 = vld [vmem:[#allocation14 + $0x38] sm:$0xf]
    %v762 = vld [vmem:[#allocation14 + $0x3c] sm:$0xf]
    %v763 = vld [vmem:[%s10] sm:$0x1]
    %v765 = vlaneseq
    %v766 = vshrl.u32 %v765, 7
    %v767 = vsub.s32 0, %v766
    %v768 = vrot.slane %v763, %v767
    %v786 = vunpack.c.l.b16 %v747
    %v787 = vunpack.c.l.b16 %v748
    %v788 = vunpack.c.l.b16 %v749
    %v789 = vunpack.c.l.b16 %v750
    %v790 = vunpack.c.l.b16 %v751
    %v791 = vunpack.c.l.b16 %v752
    %v792 = vunpack.c.l.b16 %v753
    %v793 = vunpack.c.l.b16 %v754
    %v794 = vunpack.c.l.b16 %v755
    %v795 = vunpack.c.l.b16 %v756
    %v796 = vunpack.c.l.b16 %v757
    %v797 = vunpack.c.l.b16 %v758
    %v798 = vunpack.c.l.b16 %v759
    %v799 = vunpack.c.l.b16 %v760
    %v800 = vunpack.c.l.b16 %v761
    %v801 = vunpack.c.l.b16 %v762
    %v802 = vpack.c.b16 %v787, %v786
    %v803 = vpack.c.b16 %v789, %v788
    %v804 = vpack.c.b16 %v791, %v790
    %v805 = vpack.c.b16 %v793, %v792
    %v806 = vpack.c.b16 %v795, %v794
    %v807 = vpack.c.b16 %v797, %v796
    %v808 = vpack.c.b16 %v799, %v798
    %v809 = vpack.c.b16 %v801, %v800
    %818 = vmatprep.subr.bf16.mxu0 0
    %819 = vmatpush1.bf16.msra.mxu0 %v802
    %820 = vmatprep.subr.bf16.mxu0 0
    %821 = vmatpush1.bf16.msra.mxu0 %v803
    %822 = vmatprep.subr.bf16.mxu0 0
    %823 = vmatpush1.bf16.msra.mxu0 %v804
    %824 = vmatprep.subr.bf16.mxu0 0
    %825 = vmatpush1.bf16.msra.mxu0 %v805
    %826 = vmatprep.subr.bf16.mxu0 0
    %827 = vmatpush1.bf16.msra.mxu0 %v806
    %828 = vmatprep.subr.bf16.mxu0 0
    %829 = vmatpush1.bf16.msra.mxu0 %v807
    %830 = vmatprep.subr.bf16.mxu0 0
    %831 = vmatpush1.bf16.msra.mxu0 %v808
    %832 = vmatprep.subr.bf16.mxu0 0
    %833 = vmatpush1.bf16.msra.mxu0 %v809
    %834 = vmatprep.subr.bf16.mxu0 0
    %835 = vmatpush1.bf16.msra.mxu0 0
    %836 = vmatprep.subr.bf16.mxu0 0
    %837 = vmatpush1.bf16.msra.mxu0 0
    %838 = vmatprep.subr.bf16.mxu0 0
    %839 = vmatpush1.bf16.msra.mxu0 0
    %840 = vmatprep.subr.bf16.mxu0 0
    %841 = vmatpush1.bf16.msra.mxu0 0
    %842 = vmatprep.subr.bf16.mxu0 0
    %843 = vmatpush1.bf16.msra.mxu0 0
    %844 = vmatprep.subr.bf16.mxu0 0
    %845 = vmatpush1.bf16.msra.mxu0 0
    %846 = vmatprep.subr.bf16.mxu0 0
    %847 = vmatpush1.bf16.msra.mxu0 0
    %848 = vmatprep.subr.bf16.mxu0 0
    %849 = vmatpush1.bf16.msra.mxu0 0
    %850 = vmatprep.mubr.bf16.mxu0 0
    %851 = vmatmul.mubr.bf16.gmra.mrb[0].mxu0 %v746
    %v852 = vpop.f32.mrb[0].mxu0
    %v853 = vadd.f32 %v768, %v852
    %v854 = vpop.f32.mrb[0].mxu0
    %v855 = vpop.f32.mrb[0].mxu0
    %v856 = vadd.f32 %v768, %v855
    %v857 = vpop.f32.mrb[0].mxu0
    %858 = vdwg.mxu0
    %859 = vst [vmem:[#allocation25] sm:$0xff] %v853
    %860 = vst [vmem:[#allocation25 + $0x8] sm:$0xff] %v856
    %v861 = vld [vmem:[#allocation16] sm:$0xf]
    %v862 = vld [vmem:[#allocation16 + $0x4] sm:$0xf]
    %v863 = vld [vmem:[#allocation16 + $0x8] sm:$0xf]
    %v864 = vld [vmem:[#allocation16 + $0xc] sm:$0xf]
    %v865 = vld [vmem:[#allocation16 + $0x10] sm:$0xf]
    %v866 = vld [vmem:[#allocation16 + $0x14] sm:$0xf]
    %v867 = vld [vmem:[#allocation16 + $0x18] sm:$0xf]
    %v868 = vld [vmem:[#allocation16 + $0x1c] sm:$0xf]
    %v869 = vld [vmem:[#allocation16 + $0x20] sm:$0xf]
    %v870 = vld [vmem:[#allocation16 + $0x24] sm:$0xf]
    %v871 = vld [vmem:[#allocation16 + $0x28] sm:$0xf]
    %v872 = vld [vmem:[#allocation16 + $0x2c] sm:$0xf]
    %v873 = vld [vmem:[#allocation16 + $0x30] sm:$0xf]
    %v874 = vld [vmem:[#allocation16 + $0x34] sm:$0xf]
    %v875 = vld [vmem:[#allocation16 + $0x38] sm:$0xf]
    %v876 = vld [vmem:[#allocation16 + $0x3c] sm:$0xf]
    %v877 = vld [vmem:[%s12] sm:$0x1]
    %v879 = vlaneseq
    %v880 = vshrl.u32 %v879, 7
    %v881 = vsub.s32 0, %v880
    %v882 = vrot.slane %v877, %v881
    %v900 = vunpack.c.l.b16 %v861
    %v901 = vunpack.c.l.b16 %v862
    %v902 = vunpack.c.l.b16 %v863
    %v903 = vunpack.c.l.b16 %v864
    %v904 = vunpack.c.l.b16 %v865
    %v905 = vunpack.c.l.b16 %v866
    %v906 = vunpack.c.l.b16 %v867
    %v907 = vunpack.c.l.b16 %v868
    %v908 = vunpack.c.l.b16 %v869
    %v909 = vunpack.c.l.b16 %v870
    %v910 = vunpack.c.l.b16 %v871
    %v911 = vunpack.c.l.b16 %v872
    %v912 = vunpack.c.l.b16 %v873
    %v913 = vunpack.c.l.b16 %v874
    %v914 = vunpack.c.l.b16 %v875
    %v915 = vunpack.c.l.b16 %v876
    %v916 = vpack.c.b16 %v901, %v900
    %v917 = vpack.c.b16 %v903, %v902
    %v918 = vpack.c.b16 %v905, %v904
    %v919 = vpack.c.b16 %v907, %v906
    %v920 = vpack.c.b16 %v909, %v908
    %v921 = vpack.c.b16 %v911, %v910
    %v922 = vpack.c.b16 %v913, %v912
    %v923 = vpack.c.b16 %v915, %v914
    %932 = vmatprep.subr.bf16.mxu0 0
    %933 = vmatpush1.bf16.msra.mxu0 %v916
    %934 = vmatprep.subr.bf16.mxu0 0
    %935 = vmatpush1.bf16.msra.mxu0 %v917
    %936 = vmatprep.subr.bf16.mxu0 0
    %937 = vmatpush1.bf16.msra.mxu0 %v918
    %938 = vmatprep.subr.bf16.mxu0 0
    %939 = vmatpush1.bf16.msra.mxu0 %v919
    %940 = vmatprep.subr.bf16.mxu0 0
    %941 = vmatpush1.bf16.msra.mxu0 %v920
    %942 = vmatprep.subr.bf16.mxu0 0
    %943 = vmatpush1.bf16.msra.mxu0 %v921
    %944 = vmatprep.subr.bf16.mxu0 0
    %945 = vmatpush1.bf16.msra.mxu0 %v922
    %946 = vmatprep.subr.bf16.mxu0 0
    %947 = vmatpush1.bf16.msra.mxu0 %v923
    %948 = vmatprep.subr.bf16.mxu0 0
    %949 = vmatpush1.bf16.msra.mxu0 0
    %950 = vmatprep.subr.bf16.mxu0 0
    %951 = vmatpush1.bf16.msra.mxu0 0
    %952 = vmatprep.subr.bf16.mxu0 0
    %953 = vmatpush1.bf16.msra.mxu0 0
    %954 = vmatprep.subr.bf16.mxu0 0
    %955 = vmatpush1.bf16.msra.mxu0 0
    %956 = vmatprep.subr.bf16.mxu0 0
    %957 = vmatpush1.bf16.msra.mxu0 0
    %958 = vmatprep.subr.bf16.mxu0 0
    %959 = vmatpush1.bf16.msra.mxu0 0
    %960 = vmatprep.subr.bf16.mxu0 0
    %961 = vmatpush1.bf16.msra.mxu0 0
    %962 = vmatprep.subr.bf16.mxu0 0
    %963 = vmatpush1.bf16.msra.mxu0 0
    %964 = vmatprep.mubr.bf16.mxu0 0
    %965 = vmatmul.mubr.bf16.gmra.mrb[0].mxu0 %v746
    %v966 = vpop.f32.mrb[0].mxu0
    %v967 = vadd.f32 %v882, %v966
    %v968 = vpop.f32.mrb[0].mxu0
    %v969 = vpop.f32.mrb[0].mxu0
    %v970 = vadd.f32 %v882, %v969
    %v971 = vpop.f32.mrb[0].mxu0
    %972 = vdwg.mxu0
    %v973 = vmax.f32 %v967, 0.0
    %v974 = vmax.f32 %v970, 0.0
    %v975 = vld [vmem:[#allocation8] sm:$0xf]
    %v976 = vld [vmem:[#allocation8 + $0x4] sm:$0xf]
    %v977 = vld [vmem:[#allocation17] sm:$0xf]
    %v978 = vld [vmem:[#allocation17 + $0x4] sm:$0xf]
    %v979 = vld [vmem:[#allocation17 + $0x8] sm:$0xf]
    %v980 = vld [vmem:[#allocation17 + $0xc] sm:$0xf]
    %v981 = vld [vmem:[#allocation17 + $0x10] sm:$0xf]
    %v982 = vld [vmem:[#allocation17 + $0x14] sm:$0xf]
    %v983 = vld [vmem:[#allocation17 + $0x18] sm:$0xf]
    %v984 = vld [vmem:[#allocation17 + $0x1c] sm:$0xf]
    %v985 = vld [vmem:[#allocation17 + $0x20] sm:$0xf]
    %v986 = vld [vmem:[#allocation17 + $0x24] sm:$0xf]
    %v987 = vld [vmem:[#allocation17 + $0x28] sm:$0xf]
    %v988 = vld [vmem:[#allocation17 + $0x2c] sm:$0xf]
    %v989 = vld [vmem:[#allocation17 + $0x30] sm:$0xf]
    %v990 = vld [vmem:[#allocation17 + $0x34] sm:$0xf]
    %v991 = vld [vmem:[#allocation17 + $0x38] sm:$0xf]
    %v992 = vld [vmem:[#allocation17 + $0x3c] sm:$0xf]
    %v993 = vld [vmem:[#allocation19] sm:$0x1]
    %v995 = vlaneseq
    %v996 = vshrl.u32 %v995, 7
    %v997 = vsub.s32 0, %v996
    %v998 = vrot.slane %v993, %v997
    %v1002 = vunpack.c.l.b16 %v975
    %v1003 = vunpack.c.l.b16 %v976
    %v1004 = vpack.c.b16 %v1003, %v1002
    %v1022 = vunpack.c.l.b16 %v977
    %v1023 = vunpack.c.l.b16 %v978
    %v1024 = vunpack.c.l.b16 %v979
    %v1025 = vunpack.c.l.b16 %v980
    %v1026 = vunpack.c.l.b16 %v981
    %v1027 = vunpack.c.l.b16 %v982
    %v1028 = vunpack.c.l.b16 %v983
    %v1029 = vunpack.c.l.b16 %v984
    %v1030 = vunpack.c.l.b16 %v985
    %v1031 = vunpack.c.l.b16 %v986
    %v1032 = vunpack.c.l.b16 %v987
    %v1033 = vunpack.c.l.b16 %v988
    %v1034 = vunpack.c.l.b16 %v989
    %v1035 = vunpack.c.l.b16 %v990
    %v1036 = vunpack.c.l.b16 %v991
    %v1037 = vunpack.c.l.b16 %v992
    %v1038 = vpack.c.b16 %v1023, %v1022
    %v1039 = vpack.c.b16 %v1025, %v1024
    %v1040 = vpack.c.b16 %v1027, %v1026
    %v1041 = vpack.c.b16 %v1029, %v1028
    %v1042 = vpack.c.b16 %v1031, %v1030
    %v1043 = vpack.c.b16 %v1033, %v1032
    %v1044 = vpack.c.b16 %v1035, %v1034
    %v1045 = vpack.c.b16 %v1037, %v1036
    %1054 = vmatprep.subr.bf16.mxu0 0
    %1055 = vmatpush1.bf16.msra.mxu0 %v1038
    %1056 = vmatprep.subr.bf16.mxu0 0
    %1057 = vmatpush1.bf16.msra.mxu0 %v1039
    %1058 = vmatprep.subr.bf16.mxu0 0
    %1059 = vmatpush1.bf16.msra.mxu0 %v1040
    %1060 = vmatprep.subr.bf16.mxu0 0
    %1061 = vmatpush1.bf16.msra.mxu0 %v1041
    %1062 = vmatprep.subr.bf16.mxu0 0
    %1063 = vmatpush1.bf16.msra.mxu0 %v1042
    %1064 = vmatprep.subr.bf16.mxu0 0
    %1065 = vmatpush1.bf16.msra.mxu0 %v1043
    %1066 = vmatprep.subr.bf16.mxu0 0
    %1067 = vmatpush1.bf16.msra.mxu0 %v1044
    %1068 = vmatprep.subr.bf16.mxu0 0
    %1069 = vmatpush1.bf16.msra.mxu0 %v1045
    %1070 = vmatprep.subr.bf16.mxu0 0
    %1071 = vmatpush1.bf16.msra.mxu0 0
    %1072 = vmatprep.subr.bf16.mxu0 0
    %1073 = vmatpush1.bf16.msra.mxu0 0
    %1074 = vmatprep.subr.bf16.mxu0 0
    %1075 = vmatpush1.bf16.msra.mxu0 0
    %1076 = vmatprep.subr.bf16.mxu0 0
    %1077 = vmatpush1.bf16.msra.mxu0 0
    %1078 = vmatprep.subr.bf16.mxu0 0
    %1079 = vmatpush1.bf16.msra.mxu0 0
    %1080 = vmatprep.subr.bf16.mxu0 0
    %1081 = vmatpush1.bf16.msra.mxu0 0
    %1082 = vmatprep.subr.bf16.mxu0 0
    %1083 = vmatpush1.bf16.msra.mxu0 0
    %1084 = vmatprep.subr.bf16.mxu0 0
    %1085 = vmatpush1.bf16.msra.mxu0 0
    %1086 = vmatprep.mubr.bf16.mxu0 0
    %1087 = vmatmul.mubr.bf16.gmra.mrb[0].mxu0 %v1004
    %v1088 = vpop.f32.mrb[0].mxu0
    %v1089 = vadd.f32 %v998, %v1088
    %v1090 = vpop.f32.mrb[0].mxu0
    %v1091 = vpop.f32.mrb[0].mxu0
    %v1092 = vadd.f32 %v998, %v1091
    %v1093 = vpop.f32.mrb[0].mxu0
    %1094 = vdwg.mxu0
    %v1095 = vadd.f32 %v1089, %v414
    %v1096 = vadd.f32 %v1092, %v415
    %v1097 = vtanh.pop %v1095
    %v1098 = vtanh.pop %v1096
    %v1099 = vpack.c.bf16 %v1097, %v1097
    %v1100 = vpack.c.bf16 %v1098, %v1098
    %v1101 = vpack.c.bf16 %v973, %v973
    %v1102 = vpack.c.bf16 %v974, %v974
    %1103 = vmatprep.subr.bf16.mxu0 0
    %1104 = vmatpush1.bf16.xpose.msra.mxu0 %v1101
    %1105 = vmatprep.subr.bf16.mxu0 0
    %1106 = vmatpush1.bf16.xpose.msra.mxu0 0
    %1107 = vmatprep.subr.bf16.mxu0 0
    %1108 = vmatpush1.bf16.xpose.msra.mxu0 0
    %1109 = vmatprep.subr.bf16.mxu0 0
    %1110 = vmatpush1.bf16.xpose.msra.mxu0 0
    %1111 = vmatprep.subr.bf16.mxu0 0
    %1112 = vmatpush1.bf16.xpose.msra.mxu0 0
    %1113 = vmatprep.subr.bf16.mxu0 0
    %1114 = vmatpush1.bf16.xpose.msra.mxu0 0
    %1115 = vmatprep.subr.bf16.mxu0 0
    %1116 = vmatpush1.bf16.xpose.msra.mxu0 0
    %1117 = vmatprep.subr.bf16.mxu0 0
    %1118 = vmatpush1.bf16.xpose.msra.mxu0 0
    %1119 = vmatprep.subr.bf16.mxu0 0
    %1120 = vmatpush1.bf16.xpose.msra.mxu0 0
    %1121 = vmatprep.subr.bf16.mxu0 0
    %1122 = vmatpush1.bf16.xpose.msra.mxu0 0
    %1123 = vmatprep.subr.bf16.mxu0 0
    %1124 = vmatpush1.bf16.xpose.msra.mxu0 0
    %1125 = vmatprep.subr.bf16.mxu0 0
    %1126 = vmatpush1.bf16.xpose.msra.mxu0 0
    %1127 = vmatprep.subr.bf16.mxu0 0
    %1128 = vmatpush1.bf16.xpose.msra.mxu0 0
    %1129 = vmatprep.subr.bf16.mxu0 0
    %1130 = vmatpush1.bf16.xpose.msra.mxu0 0
    %1131 = vmatprep.subr.bf16.mxu0 0
    %1132 = vmatpush1.bf16.xpose.msra.mxu0 0
    %1133 = vmatprep.subr.bf16.mxu0 0
    %1134 = vmatpush1.bf16.xpose.msra.mxu0 0
    %1135 = vmatprep.mubr.bf16.mxu0 0
    %1136 = vmatmul.mubr.bf16.gmra.mrb[0].mxu0 %v1099
    %v1137 = vpop.f32.mrb[0].mxu0
    %v1138 = vadd.f32 0.0, %v1137
    %v1139 = vpop.f32.mrb[0].mxu0
    %v1140 = vpop.f32.mrb[0].mxu0
    %v1141 = vpop.f32.mrb[0].mxu0
    %1142 = vdwg.mxu0
    %1143 = vmatprep.subr.bf16.mxu0 0
    %1144 = vmatpush1.bf16.xpose.msra.mxu0 %v1102
    %1145 = vmatprep.subr.bf16.mxu0 0
    %1146 = vmatpush1.bf16.xpose.msra.mxu0 0
    %1147 = vmatprep.subr.bf16.mxu0 0
    %1148 = vmatpush1.bf16.xpose.msra.mxu0 0
    %1149 = vmatprep.subr.bf16.mxu0 0
    %1150 = vmatpush1.bf16.xpose.msra.mxu0 0
    %1151 = vmatprep.subr.bf16.mxu0 0
    %1152 = vmatpush1.bf16.xpose.msra.mxu0 0
    %1153 = vmatprep.subr.bf16.mxu0 0
    %1154 = vmatpush1.bf16.xpose.msra.mxu0 0
    %1155 = vmatprep.subr.bf16.mxu0 0
    %1156 = vmatpush1.bf16.xpose.msra.mxu0 0
    %1157 = vmatprep.subr.bf16.mxu0 0
    %1158 = vmatpush1.bf16.xpose.msra.mxu0 0
    %1159 = vmatprep.subr.bf16.mxu0 0
    %1160 = vmatpush1.bf16.xpose.msra.mxu0 0
    %1161 = vmatprep.subr.bf16.mxu0 0
    %1162 = vmatpush1.bf16.xpose.msra.mxu0 0
    %1163 = vmatprep.subr.bf16.mxu0 0
    %1164 = vmatpush1.bf16.xpose.msra.mxu0 0
    %1165 = vmatprep.subr.bf16.mxu0 0
    %1166 = vmatpush1.bf16.xpose.msra.mxu0 0
    %1167 = vmatprep.subr.bf16.mxu0 0
    %1168 = vmatpush1.bf16.xpose.msra.mxu0 0
    %1169 = vmatprep.subr.bf16.mxu0 0
    %1170 = vmatpush1.bf16.xpose.msra.mxu0 0
    %1171 = vmatprep.subr.bf16.mxu0 0
    %1172 = vmatpush1.bf16.xpose.msra.mxu0 0
    %1173 = vmatprep.subr.bf16.mxu0 0
    %1174 = vmatpush1.bf16.xpose.msra.mxu0 0
    %1175 = vmatprep.mubr.bf16.mxu0 0
    %1176 = vmatmul.mubr.bf16.gmra.mrb[0].mxu0 %v1100
    %v1177 = vpop.f32.mrb[0].mxu0
    %v1178 = vadd.f32 0.0, %v1177
    %v1179 = vpop.f32.mrb[0].mxu0
    %v1180 = vpop.f32.mrb[0].mxu0
    %v1181 = vpop.f32.mrb[0].mxu0
    %1182 = vdwg.mxu0
    %v1183 = vmul.f32 %v1138, 0.17677669
    %v1184 = vmul.f32 %v1178, 0.17677669
    %vm1185 = vcmask 64512
    %v1186 = vsel %vm1185, %v1183, -inf
    %1187 = vmax.xlane.f32.xlu0 %v1186
    %v1188 = vpop.xlane.xlu0 %1187
    %v1189 = vsel %vm1185, %v1184, -inf
    %1190 = vmax.xlane.f32.xlu0 %v1189
    %v1191 = vpop.xlane.xlu0 %1190
    %v1192 = vsub.f32 %v1183, %v1188
    %v1193 = vsub.f32 %v1184, %v1191
    %v1194 = vmul.f32 %v1192, 1.442695
    %v1195 = vpow.pop %v1194
    %v1196 = vmul.f32 %v1193, 1.442695
    %v1197 = vpow.pop %v1196
    %v1198 = vsel %vm1185, %v1195, 0.0
    %1199 = vadd.xlane.f32.xlu0 %v1198
    %v1200 = vpop.xlane.xlu0 %1199
    %v1201 = vsel %vm1185, %v1197, 0.0
    %1202 = vadd.xlane.f32.xlu0 %v1201
    %v1203 = vpop.xlane.xlu0 %1202
    %v1204 = vrcp.pop %v1200
    %v1205 = vrcp.pop %v1203
    %v1206 = vpack.c.bf16 %v1195, %v1195
    %v1207 = vpack.c.bf16 %v1197, %v1197
    %v1209 = vsel %vm1185, %v1206, 0
    %vm1211 = vcmask 1043456
    %v1213 = vsel %vm1211, %v1101, 0
    %1215 = vmatprep.subr.bf16.mxu0 0
    %1216 = vmatpush1.bf16.msra.mxu0 %v1213
    %1217 = vmatprep.subr.bf16.mxu0 0
    %1218 = vmatpush1.bf16.msra.mxu0 0
    %1219 = vmatprep.subr.bf16.mxu0 0
    %1220 = vmatpush1.bf16.msra.mxu0 0
    %1221 = vmatprep.subr.bf16.mxu0 0
    %1222 = vmatpush1.bf16.msra.mxu0 0
    %1223 = vmatprep.subr.bf16.mxu0 0
    %1224 = vmatpush1.bf16.msra.mxu0 0
    %1225 = vmatprep.subr.bf16.mxu0 0
    %1226 = vmatpush1.bf16.msra.mxu0 0
    %1227 = vmatprep.subr.bf16.mxu0 0
    %1228 = vmatpush1.bf16.msra.mxu0 0
    %1229 = vmatprep.subr.bf16.mxu0 0
    %1230 = vmatpush1.bf16.msra.mxu0 0
    %1231 = vmatprep.subr.bf16.mxu0 0
    %1232 = vmatpush1.bf16.msra.mxu0 0
    %1233 = vmatprep.subr.bf16.mxu0 0
    %1234 = vmatpush1.bf16.msra.mxu0 0
    %1235 = vmatprep.subr.bf16.mxu0 0
    %1236 = vmatpush1.bf16.msra.mxu0 0
    %1237 = vmatprep.subr.bf16.mxu0 0
    %1238 = vmatpush1.bf16.msra.mxu0 0
    %1239 = vmatprep.subr.bf16.mxu0 0
    %1240 = vmatpush1.bf16.msra.mxu0 0
    %1241 = vmatprep.subr.bf16.mxu0 0
    %1242 = vmatpush1.bf16.msra.mxu0 0
    %1243 = vmatprep.subr.bf16.mxu0 0
    %1244 = vmatpush1.bf16.msra.mxu0 0
    %1245 = vmatprep.subr.bf16.mxu0 0
    %1246 = vmatpush1.bf16.msra.mxu0 0
    %1247 = vmatprep.mubr.bf16.mxu0 0
    %1248 = vmatmul.mubr.bf16.gmra.mrb[0].mxu0 %v1209
    %v1249 = vpop.f32.mrb[0].mxu0
    %v1250 = vadd.f32 0.0, %v1249
    %v1251 = vpop.f32.mrb[0].mxu0
    %v1252 = vpop.f32.mrb[0].mxu0
    %v1253 = vpop.f32.mrb[0].mxu0
    %1254 = vdwg.mxu0
    %v1256 = vsel %vm1185, %v1207, 0
    %v1259 = vsel %vm1211, %v1102, 0
    %1261 = vmatprep.subr.bf16.mxu0 0
    %1262 = vmatpush1.bf16.msra.mxu0 %v1259
    %1263 = vmatprep.subr.bf16.mxu0 0
    %1264 = vmatpush1.bf16.msra.mxu0 0
    %1265 = vmatprep.subr.bf16.mxu0 0
    %1266 = vmatpush1.bf16.msra.mxu0 0
    %1267 = vmatprep.subr.bf16.mxu0 0
    %1268 = vmatpush1.bf16.msra.mxu0 0
    %1269 = vmatprep.subr.bf16.mxu0 0
    %1270 = vmatpush1.bf16.msra.mxu0 0
    %1271 = vmatprep.subr.bf16.mxu0 0
    %1272 = vmatpush1.bf16.msra.mxu0 0
    %1273 = vmatprep.subr.bf16.mxu0 0
    %1274 = vmatpush1.bf16.msra.mxu0 0
    %1275 = vmatprep.subr.bf16.mxu0 0
    %1276 = vmatpush1.bf16.msra.mxu0 0
    %1277 = vmatprep.subr.bf16.mxu0 0
    %1278 = vmatpush1.bf16.msra.mxu0 0
    %1279 = vmatprep.subr.bf16.mxu0 0
    %1280 = vmatpush1.bf16.msra.mxu0 0
    %1281 = vmatprep.subr.bf16.mxu0 0
    %1282 = vmatpush1.bf16.msra.mxu0 0
    %1283 = vmatprep.subr.bf16.mxu0 0
    %1284 = vmatpush1.bf16.msra.mxu0 0
    %1285 = vmatprep.subr.bf16.mxu0 0
    %1286 = vmatpush1.bf16.msra.mxu0 0
    %1287 = vmatprep.subr.bf16.mxu0 0
    %1288 = vmatpush1.bf16.msra.mxu0 0
    %1289 = vmatprep.subr.bf16.mxu0 0
    %1290 = vmatpush1.bf16.msra.mxu0 0
    %1291 = vmatprep.subr.bf16.mxu0 0
    %1292 = vmatpush1.bf16.msra.mxu0 0
    %1293 = vmatprep.mubr.bf16.mxu0 0
    %1294 = vmatmul.mubr.bf16.gmra.mrb[0].mxu0 %v1256
    %v1295 = vpop.f32.mrb[0].mxu0
    %v1296 = vadd.f32 0.0, %v1295
    %v1297 = vpop.f32.mrb[0].mxu0
    %v1298 = vpop.f32.mrb[0].mxu0
    %v1299 = vpop.f32.mrb[0].mxu0
    %1300 = vdwg.mxu0
    %v1301 = vmul.f32 %v1250, %v1204
    %v1302 = vmul.f32 %v1296, %v1205
    %v1303 = vmul.f32 %v1195, %v1204
    %v1304 = vmul.f32 %v1197, %v1205
    %1305 = vst.msk [vmem:[#allocation26] sm:$0xff] %vm1185, %v1303
    %1306 = vst.msk [vmem:[#allocation26 + $0x8] sm:$0xff] %vm1185, %v1304
    %v1307 = vpack.c.bf16 %v1098, %v1097
    %v1308 = vld [vmem:[#allocation20] sm:$0xf]
    %v1309 = vld [vmem:[#allocation20 + $0x4] sm:$0xf]
    %v1310 = vld [vmem:[#allocation20 + $0x8] sm:$0xf]
    %v1311 = vld [vmem:[#allocation20 + $0xc] sm:$0xf]
    %v1312 = vld [vmem:[#allocation20 + $0x10] sm:$0xf]
    %v1313 = vld [vmem:[#allocation20 + $0x14] sm:$0xf]
    %v1314 = vld [vmem:[#allocation20 + $0x18] sm:$0xf]
    %v1315 = vld [vmem:[#allocation20 + $0x1c] sm:$0xf]
    %v1316 = vld [vmem:[#allocation20 + $0x20] sm:$0xf]
    %v1317 = vld [vmem:[#allocation20 + $0x24] sm:$0xf]
    %v1318 = vld [vmem:[#allocation20 + $0x28] sm:$0xf]
    %v1319 = vld [vmem:[#allocation20 + $0x2c] sm:$0xf]
    %v1320 = vld [vmem:[#allocation20 + $0x30] sm:$0xf]
    %v1321 = vld [vmem:[#allocation20 + $0x34] sm:$0xf]
    %v1322 = vld [vmem:[#allocation20 + $0x38] sm:$0xf]
    %v1323 = vld [vmem:[#allocation20 + $0x3c] sm:$0xf]
    %v1324 = vpack.c.bf16 %v1302, %v1301
    %v1325 = vld [vmem:[#allocation22] sm:$0xf]
    %v1326 = vld [vmem:[#allocation22 + $0x4] sm:$0xf]
    %v1327 = vld [vmem:[#allocation22 + $0x8] sm:$0xf]
    %v1328 = vld [vmem:[#allocation22 + $0xc] sm:$0xf]
    %v1329 = vld [vmem:[#allocation22 + $0x10] sm:$0xf]
    %v1330 = vld [vmem:[#allocation22 + $0x14] sm:$0xf]
    %v1331 = vld [vmem:[#allocation22 + $0x18] sm:$0xf]
    %v1332 = vld [vmem:[#allocation22 + $0x1c] sm:$0xf]
    %v1333 = vld [vmem:[#allocation22 + $0x20] sm:$0xf]
    %v1334 = vld [vmem:[#allocation22 + $0x24] sm:$0xf]
    %v1335 = vld [vmem:[#allocation22 + $0x28] sm:$0xf]
    %v1336 = vld [vmem:[#allocation22 + $0x2c] sm:$0xf]
    %v1337 = vld [vmem:[#allocation22 + $0x30] sm:$0xf]
    %v1338 = vld [vmem:[#allocation22 + $0x34] sm:$0xf]
    %v1339 = vld [vmem:[#allocation22 + $0x38] sm:$0xf]
    %v1340 = vld [vmem:[#allocation22 + $0x3c] sm:$0xf]
    %v1357 = vunpack.c.l.b16 %v1325
    %v1358 = vunpack.c.l.b16 %v1326
    %v1359 = vunpack.c.l.b16 %v1327
    %v1360 = vunpack.c.l.b16 %v1328
    %v1361 = vunpack.c.l.b16 %v1329
    %v1362 = vunpack.c.l.b16 %v1330
    %v1363 = vunpack.c.l.b16 %v1331
    %v1364 = vunpack.c.l.b16 %v1332
    %v1365 = vunpack.c.l.b16 %v1333
    %v1366 = vunpack.c.l.b16 %v1334
    %v1367 = vunpack.c.l.b16 %v1335
    %v1368 = vunpack.c.l.b16 %v1336
    %v1369 = vunpack.c.l.b16 %v1337
    %v1370 = vunpack.c.l.b16 %v1338
    %v1371 = vunpack.c.l.b16 %v1339
    %v1372 = vunpack.c.l.b16 %v1340
    %v1373 = vpack.c.b16 %v1358, %v1357
    %v1374 = vpack.c.b16 %v1360, %v1359
    %v1375 = vpack.c.b16 %v1362, %v1361
    %v1376 = vpack.c.b16 %v1364, %v1363
    %v1377 = vpack.c.b16 %v1366, %v1365
    %v1378 = vpack.c.b16 %v1368, %v1367
    %v1379 = vpack.c.b16 %v1370, %v1369
    %v1380 = vpack.c.b16 %v1372, %v1371
    %1389 = vmatprep.subr.bf16.mxu0 0
    %1390 = vmatpush1.bf16.msra.mxu0 %v1373
    %1391 = vmatprep.subr.bf16.mxu0 0
    %1392 = vmatpush1.bf16.msra.mxu0 %v1374
    %1393 = vmatprep.subr.bf16.mxu0 0
    %1394 = vmatpush1.bf16.msra.mxu0 %v1375
    %1395 = vmatprep.subr.bf16.mxu0 0
    %1396 = vmatpush1.bf16.msra.mxu0 %v1376
    %1397 = vmatprep.subr.bf16.mxu0 0
    %1398 = vmatpush1.bf16.msra.mxu0 %v1377
    %1399 = vmatprep.subr.bf16.mxu0 0
    %1400 = vmatpush1.bf16.msra.mxu0 %v1378
    %1401 = vmatprep.subr.bf16.mxu0 0
    %1402 = vmatpush1.bf16.msra.mxu0 %v1379
    %1403 = vmatprep.subr.bf16.mxu0 0
    %1404 = vmatpush1.bf16.msra.mxu0 %v1380
    %1405 = vmatprep.subr.bf16.mxu0 0
    %1406 = vmatpush1.bf16.msra.mxu0 0
    %1407 = vmatprep.subr.bf16.mxu0 0
    %1408 = vmatpush1.bf16.msra.mxu0 0
    %1409 = vmatprep.subr.bf16.mxu0 0
    %1410 = vmatpush1.bf16.msra.mxu0 0
    %1411 = vmatprep.subr.bf16.mxu0 0
    %1412 = vmatpush1.bf16.msra.mxu0 0
    %1413 = vmatprep.subr.bf16.mxu0 0
    %1414 = vmatpush1.bf16.msra.mxu0 0
    %1415 = vmatprep.subr.bf16.mxu0 0
    %1416 = vmatpush1.bf16.msra.mxu0 0
    %1417 = vmatprep.subr.bf16.mxu0 0
    %1418 = vmatpush1.bf16.msra.mxu0 0
    %1419 = vmatprep.subr.bf16.mxu0 0
    %1420 = vmatpush1.bf16.msra.mxu0 0
    %1421 = vmatprep.mubr.bf16.mxu0 0
    %1422 = vmatmul.mubr.bf16.gmra.mrb[0].mxu0 %v1324
    %v1423 = vpop.f32.mrb[0].mxu0
    %v1424 = vadd.f32 0.0, %v1423
    %v1425 = vpop.f32.mrb[0].mxu0
    %v1426 = vpop.f32.mrb[0].mxu0
    %v1427 = vadd.f32 0.0, %v1426
    %v1428 = vpop.f32.mrb[0].mxu0
    %1429 = vdwg.mxu0
    %v1446 = vunpack.c.l.b16 %v1308
    %v1447 = vunpack.c.l.b16 %v1309
    %v1448 = vunpack.c.l.b16 %v1310
    %v1449 = vunpack.c.l.b16 %v1311
    %v1450 = vunpack.c.l.b16 %v1312
    %v1451 = vunpack.c.l.b16 %v1313
    %v1452 = vunpack.c.l.b16 %v1314
    %v1453 = vunpack.c.l.b16 %v1315
    %v1454 = vunpack.c.l.b16 %v1316
    %v1455 = vunpack.c.l.b16 %v1317
    %v1456 = vunpack.c.l.b16 %v1318
    %v1457 = vunpack.c.l.b16 %v1319
    %v1458 = vunpack.c.l.b16 %v1320
    %v1459 = vunpack.c.l.b16 %v1321
    %v1460 = vunpack.c.l.b16 %v1322
    %v1461 = vunpack.c.l.b16 %v1323
    %v1462 = vpack.c.b16 %v1447, %v1446
    %v1463 = vpack.c.b16 %v1449, %v1448
    %v1464 = vpack.c.b16 %v1451, %v1450
    %v1465 = vpack.c.b16 %v1453, %v1452
    %v1466 = vpack.c.b16 %v1455, %v1454
    %v1467 = vpack.c.b16 %v1457, %v1456
    %v1468 = vpack.c.b16 %v1459, %v1458
    %v1469 = vpack.c.b16 %v1461, %v1460
    %1478 = vmatprep.subr.bf16.mxu0 0
    %1479 = vmatpush1.bf16.msra.mxu0 %v1462
    %1480 = vmatprep.subr.bf16.mxu0 0
    %1481 = vmatpush1.bf16.msra.mxu0 %v1463
    %1482 = vmatprep.subr.bf16.mxu0 0
    %1483 = vmatpush1.bf16.msra.mxu0 %v1464
    %1484 = vmatprep.subr.bf16.mxu0 0
    %1485 = vmatpush1.bf16.msra.mxu0 %v1465
    %1486 = vmatprep.subr.bf16.mxu0 0
    %1487 = vmatpush1.bf16.msra.mxu0 %v1466
    %1488 = vmatprep.subr.bf16.mxu0 0
    %1489 = vmatpush1.bf16.msra.mxu0 %v1467
    %1490 = vmatprep.subr.bf16.mxu0 0
    %1491 = vmatpush1.bf16.msra.mxu0 %v1468
    %1492 = vmatprep.subr.bf16.mxu0 0
    %1493 = vmatpush1.bf16.msra.mxu0 %v1469
    %1494 = vmatprep.subr.bf16.mxu0 0
    %1495 = vmatpush1.bf16.msra.mxu0 0
    %1496 = vmatprep.subr.bf16.mxu0 0
    %1497 = vmatpush1.bf16.msra.mxu0 0
    %1498 = vmatprep.subr.bf16.mxu0 0
    %1499 = vmatpush1.bf16.msra.mxu0 0
    %1500 = vmatprep.subr.bf16.mxu0 0
    %1501 = vmatpush1.bf16.msra.mxu0 0
    %1502 = vmatprep.subr.bf16.mxu0 0
    %1503 = vmatpush1.bf16.msra.mxu0 0
    %1504 = vmatprep.subr.bf16.mxu0 0
    %1505 = vmatpush1.bf16.msra.mxu0 0
    %1506 = vmatprep.subr.bf16.mxu0 0
    %1507 = vmatpush1.bf16.msra.mxu0 0
    %1508 = vmatprep.subr.bf16.mxu0 0
    %1509 = vmatpush1.bf16.msra.mxu0 0
    %1510 = vmatprep.mubr.bf16.mxu0 0
    %1511 = vmatmul.mubr.bf16.gmra.mrb[0].mxu0 %v1307
    %v1512 = vpop.f32.mrb[0].mxu0
    %v1513 = vadd.f32 %v1424, %v1512
    %v1514 = vpop.f32.mrb[0].mxu0
    %v1515 = vpop.f32.mrb[0].mxu0
    %v1516 = vadd.f32 %v1427, %v1515
    %v1517 = vpop.f32.mrb[0].mxu0
    %1518 = vdwg.mxu0
    %v1519 = vld [vmem:[#allocation23] sm:$0x1]
    %v1521 = vlaneseq
    %v1522 = vshrl.u32 %v1521, 7
    %v1523 = vsub.s32 0, %v1522
    %v1524 = vrot.slane %v1519, %v1523
    %v1526 = vadd.f32 %v1513, %v1524
    %v1527 = vadd.f32 %v1516, %v1524
    %v1528 = vtanh.pop %v1526
    %v1529 = vtanh.pop %v1527
    %1530 = vst [vmem:[#allocation28] sm:$0xff] %v1528
    %1531 = vst [vmem:[#allocation28 + $0x8] sm:$0xff] %v1529
    %v1532 = vpack.c.bf16 %v1529, %v1528
    %v1533 = vld [vmem:[%s18] sm:$0xf]
    %v1534 = vld [vmem:[%s18 + $0x4] sm:$0xf]
    %v1535 = vld [vmem:[%s18 + $0x8] sm:$0xf]
    %v1536 = vld [vmem:[%s18 + $0xc] sm:$0xf]
    %v1537 = vld [vmem:[%s18 + $0x10] sm:$0xf]
    %v1538 = vld [vmem:[%s18 + $0x14] sm:$0xf]
    %v1539 = vld [vmem:[%s18 + $0x18] sm:$0xf]
    %v1540 = vld [vmem:[%s18 + $0x1c] sm:$0xf]
    %v1541 = vld [vmem:[%s18 + $0x20] sm:$0xf]
    %v1542 = vld [vmem:[%s18 + $0x24] sm:$0xf]
    %v1543 = vld [vmem:[%s18 + $0x28] sm:$0xf]
    %v1544 = vld [vmem:[%s18 + $0x2c] sm:$0xf]
    %v1545 = vld [vmem:[%s18 + $0x30] sm:$0xf]
    %v1546 = vld [vmem:[%s18 + $0x34] sm:$0xf]
    %v1547 = vld [vmem:[%s18 + $0x38] sm:$0xf]
    %v1548 = vld [vmem:[%s18 + $0x3c] sm:$0xf]
    %v1549 = vld [vmem:[%s19] sm:$0x1]
    %v1551 = vlaneseq
    %v1552 = vshrl.u32 %v1551, 7
    %v1553 = vsub.s32 0, %v1552
    %v1554 = vrot.slane %v1549, %v1553
    %v1572 = vunpack.c.l.b16 %v1533
    %v1573 = vunpack.c.l.b16 %v1534
    %v1574 = vunpack.c.l.b16 %v1535
    %v1575 = vunpack.c.l.b16 %v1536
    %v1576 = vunpack.c.l.b16 %v1537
    %v1577 = vunpack.c.l.b16 %v1538
    %v1578 = vunpack.c.l.b16 %v1539
    %v1579 = vunpack.c.l.b16 %v1540
    %v1580 = vunpack.c.l.b16 %v1541
    %v1581 = vunpack.c.l.b16 %v1542
    %v1582 = vunpack.c.l.b16 %v1543
    %v1583 = vunpack.c.l.b16 %v1544
    %v1584 = vunpack.c.l.b16 %v1545
    %v1585 = vunpack.c.l.b16 %v1546
    %v1586 = vunpack.c.l.b16 %v1547
    %v1587 = vunpack.c.l.b16 %v1548
    %v1588 = vpack.c.b16 %v1573, %v1572
    %v1589 = vpack.c.b16 %v1575, %v1574
    %v1590 = vpack.c.b16 %v1577, %v1576
    %v1591 = vpack.c.b16 %v1579, %v1578
    %v1592 = vpack.c.b16 %v1581, %v1580
    %v1593 = vpack.c.b16 %v1583, %v1582
    %v1594 = vpack.c.b16 %v1585, %v1584
    %v1595 = vpack.c.b16 %v1587, %v1586
    %1604 = vmatprep.subr.bf16.mxu0 0
    %1605 = vmatpush1.bf16.msra.mxu0 %v1588
    %1606 = vmatprep.subr.bf16.mxu0 0
    %1607 = vmatpush1.bf16.msra.mxu0 %v1589
    %1608 = vmatprep.subr.bf16.mxu0 0
    %1609 = vmatpush1.bf16.msra.mxu0 %v1590
    %1610 = vmatprep.subr.bf16.mxu0 0
    %1611 = vmatpush1.bf16.msra.mxu0 %v1591
    %1612 = vmatprep.subr.bf16.mxu0 0
    %1613 = vmatpush1.bf16.msra.mxu0 %v1592
    %1614 = vmatprep.subr.bf16.mxu0 0
    %1615 = vmatpush1.bf16.msra.mxu0 %v1593
    %1616 = vmatprep.subr.bf16.mxu0 0
    %1617 = vmatpush1.bf16.msra.mxu0 %v1594
    %1618 = vmatprep.subr.bf16.mxu0 0
    %1619 = vmatpush1.bf16.msra.mxu0 %v1595
    %1620 = vmatprep.subr.bf16.mxu0 0
    %1621 = vmatpush1.bf16.msra.mxu0 0
    %1622 = vmatprep.subr.bf16.mxu0 0
    %1623 = vmatpush1.bf16.msra.mxu0 0
    %1624 = vmatprep.subr.bf16.mxu0 0
    %1625 = vmatpush1.bf16.msra.mxu0 0
    %1626 = vmatprep.subr.bf16.mxu0 0
    %1627 = vmatpush1.bf16.msra.mxu0 0
    %1628 = vmatprep.subr.bf16.mxu0 0
    %1629 = vmatpush1.bf16.msra.mxu0 0
    %1630 = vmatprep.subr.bf16.mxu0 0
    %1631 = vmatpush1.bf16.msra.mxu0 0
    %1632 = vmatprep.subr.bf16.mxu0 0
    %1633 = vmatpush1.bf16.msra.mxu0 0
    %1634 = vmatprep.subr.bf16.mxu0 0
    %1635 = vmatpush1.bf16.msra.mxu0 0
    %1636 = vmatprep.mubr.bf16.mxu0 0
    %1637 = vmatmul.mubr.bf16.gmra.mrb[0].mxu0 %v1532
    %v1638 = vpop.f32.mrb[0].mxu0
    %v1639 = vadd.f32 %v1554, %v1638
    %v1640 = vpop.f32.mrb[0].mxu0
    %v1641 = vpop.f32.mrb[0].mxu0
    %v1642 = vadd.f32 %v1554, %v1641
    %v1643 = vpop.f32.mrb[0].mxu0
    %1644 = vdwg.mxu0
    %1645 = vmax.xlane.f32.xlu0 %v1639
    %v1646 = vpop.xlane.xlu0 %1645
    %1647 = vmax.xlane.f32.xlu0 %v1642
    %v1648 = vpop.xlane.xlu0 %1647
    %v1649 = vsub.f32 %v1639, %v1646
    %v1650 = vsub.f32 %v1642, %v1648
    %v1651 = vmul.f32 %v1649, 1.442695
    %v1652 = vpow.pop %v1651
    %v1653 = vmul.f32 %v1650, 1.442695
    %v1654 = vpow.pop %v1653
    %1655 = vadd.xlane.f32.xlu0 %v1652
    %v1656 = vpop.xlane.xlu0 %1655
    %1657 = vadd.xlane.f32.xlu0 %v1654
    %v1658 = vpop.xlane.xlu0 %1657
    %v1659 = vlog2.pop %v1656
    %v1660 = vmul.f32 %v1659, 0.6931472
    %v1661 = vlog2.pop %v1658
    %v1662 = vmul.f32 %v1661, 0.6931472
    %v1663 = vsub.f32 %v1649, %v1660
    %v1664 = vsub.f32 %v1650, %v1662
    %1665 = vst [vmem:[#allocation29] sm:$0xff] %v1663
    %1666 = vst [vmem:[#allocation29 + $0x8] sm:$0xff] %v1664
    // Predicated region
    $region138: #{tpu_custom_call.1} parent=1 // pred_check
      _
    $region139: #{tpu_custom_call.1} parent=1 // pred_check_branch
      %1668 = sbr.rel (0) target = $region141
    $region140: #{tpu_custom_call.1} parent=1 // pred_region
      %s1670 = ssub.s32 256, 256
      %1671 = vsyncadd [#allocation4], %s1670
      %s1672 = sshll.u32 [#allocation25], 4
      %s1673 = int_to_ptr.vmem [resolvable:$true] %s1672
      %1678 = dma.vmem_to_hbm [thread:$0]  %s1673, 256, %s20, [#allocation4], 128, 128, 8
    $region141: #{tpu_custom_call.1} parent=1 // pred_fallthru
      _
    // Predicated region
    $region142: #{tpu_custom_call.1} parent=1 // pred_check
      _
    $region143: #{tpu_custom_call.1} parent=1 // pred_check_branch
      %1680 = sbr.rel (0) target = $region145
    $region144: #{tpu_custom_call.1} parent=1 // pred_region
      %s1682 = ssub.s32 256, 256
      %1683 = vsyncadd [#allocation27], %s1682
      %s1684 = sshll.u32 [#allocation26], 4
      %s1685 = int_to_ptr.vmem [resolvable:$true] %s1684
      %1690 = dma.vmem_to_hbm [thread:$0]  %s1685, 256, %s21, [#allocation27], 128, 128, 8
    $region145: #{tpu_custom_call.1} parent=1 // pred_fallthru
      _
    // Predicated region
    $region146: #{tpu_custom_call.1} parent=1 // pred_check
      _
    $region147: #{tpu_custom_call.1} parent=1 // pred_check_branch
      %1692 = sbr.rel (0) target = $region149
    $region148: #{tpu_custom_call.1} parent=1 // pred_region
      %s1694 = ssub.s32 256, 256
      %1695 = vsyncadd [#allocation27], %s1694
      %s1696 = sshll.u32 [#allocation28], 4
      %s1697 = int_to_ptr.vmem [resolvable:$true] %s1696
      %1702 = dma.vmem_to_hbm [thread:$0]  %s1697, 256, %s22, [#allocation27], 128, 128, 8
    $region149: #{tpu_custom_call.1} parent=1 // pred_fallthru
      _
    // Predicated region
    $region150: #{tpu_custom_call.1} parent=1 // pred_check
      _
    $region151: #{tpu_custom_call.1} parent=1 // pred_check_branch
      %1704 = sbr.rel (0) target = $region153
    $region152: #{tpu_custom_call.1} parent=1 // pred_region
      %s1706 = ssub.s32 256, 256
      %1707 = vsyncadd [#allocation30], %s1706
      %s1708 = sshll.u32 [#allocation29], 4
      %s1709 = int_to_ptr.vmem [resolvable:$true] %s1708
      %1714 = dma.vmem_to_hbm [thread:$0]  %s1709, 256, %s23, [#allocation30], 128, 128, 8
    $region153: #{tpu_custom_call.1} parent=1 // pred_fallthru
      _
    // Predicated region
    $region154: #{tpu_custom_call.1} parent=1 // pred_check
      _
    $region155: #{tpu_custom_call.1} parent=1 // pred_check_branch
      %1716 = sbr.rel (0) target = $region157
    $region156: #{tpu_custom_call.1} parent=1 // pred_region
      %1717 = dma.done [#allocation4], 256
    $region157: #{tpu_custom_call.1} parent=1 // pred_fallthru
      _
    // Predicated region
    $region158: #{tpu_custom_call.1} parent=1 // pred_check
      _
    $region159: #{tpu_custom_call.1} parent=1 // pred_check_branch
      %1719 = sbr.rel (0) target = $region161
    $region160: #{tpu_custom_call.1} parent=1 // pred_region
      %1720 = dma.done [#allocation27], 256
    $region161: #{tpu_custom_call.1} parent=1 // pred_fallthru
      _
    // Predicated region
    $region162: #{tpu_custom_call.1} parent=1 // pred_check
      _
    $region163: #{tpu_custom_call.1} parent=1 // pred_check_branch
      %1722 = sbr.rel (0) target = $region165
    $region164: #{tpu_custom_call.1} parent=1 // pred_region
      %1723 = dma.done [#allocation27], 256
    $region165: #{tpu_custom_call.1} parent=1 // pred_fallthru
      _
    // Predicated region
    $region166: #{tpu_custom_call.1} parent=1 // pred_check
      _
    $region167: #{tpu_custom_call.1} parent=1 // pred_check_branch
      %1725 = sbr.rel (0) target = $region169
    $region168: #{tpu_custom_call.1} parent=1 // pred_region
      %1726 = dma.done [#allocation30], 256
    $region169: #{tpu_custom_call.1} parent=1 // pred_fallthru
      _
    %1727 = vsyncpa [#allocation3], 1
    %1728 = vsyncpa [#allocation6], 1
    %1729 = vsyncpa [#allocation9], 1
    %1730 = vsyncpa [#allocation12], 1
    %1731 = vsyncpa [#allocation15], 1
    %1732 = vsyncpa [#allocation18], 1
    %1733 = vsyncpa [#allocation21], 1
    %1734 = vsyncpa [#allocation24], 1
    %1735 = vsyncpa [#allocation4], 1
    %1736 = vsyncpa [#allocation27], 1
    %1737 = vsyncpa [#allocation30], 1

</llo_original>
